<compile_context>
chip_gen: v7x
topology: tpu7x:2x2x1
jax: 0.10.0
libtpu: 0.0.40
codegen_flags: <defaults>
</compile_context>

<pallas_src>
import numpy as np

import jax
import jax.numpy as jnp
from jax.experimental import pallas as pl
from jax.experimental.pallas import tpu as pltpu


# ----------------------------------------------------------------------------
# Fused forward kernel: conv1 -> pool -> relu -> conv2 -> pool -> relu
#                       -> fc1 -> relu -> fc2, one batch tile per grid step.
# ----------------------------------------------------------------------------
def _net_fused_kernel(x_ref, w1_ref, b1_ref, w2_ref, b2_ref,
                      wf1_ref, bf1_ref, wf2_ref, bf2_ref, out_ref):
    f32 = jnp.float32
    tb = x_ref.shape[1]
    # x layout: (28, tb, 28); row index 7*g + s holds original image row 4*s+g.
    x = x_ref[...]
    w1 = w1_ref[...]

    # ---- conv1 (1 -> 10, 5x5) with 2x2 maxpool folded into the matmul -------
    # Two matmuls, one per pooled-row parity hp; rows ordered (j, b) where the
    # pooled output row is ph = 2*j + hp.  Column block ki of the im2col holds
    # input row 2*ph + ki = 4*j + (2*hp + ki)  -> contiguous slice of a mod-4
    # row group.  Weight columns = 4 blocks (H-parity x W-parity) x 128 lanes.
    p1 = []
    for hp in range(2):
        parts = []
        for ki in range(6):
            o = 2 * hp + ki                       # input-row offset, 0..7
            g, s = o % 4, o // 4                  # mod-4 group / in-group start
            parts.append(
                x[7 * g + s: 7 * g + s + 6, :, :].reshape(6 * tb, 28))
        xk = jnp.concatenate(parts, axis=-1)                       # (6*tb, 168)
        a = jnp.dot(xk, w1, preferred_element_type=f32)            # (6*tb, 512)
        m = jnp.maximum(jnp.maximum(a[:, 0:128], a[:, 128:256]),   # 2x2 pool =
                        jnp.maximum(a[:, 256:384], a[:, 384:512])) # block max
        p1.append(jnp.maximum(m + b1_ref[...], 0.0))               # (6*tb, 128)

    # ---- conv2 (10 -> 20, 5x5); Dropout2d = identity; pool folded likewise --
    # im2col rows ordered (ph2, b), ph2 = 0..3; column block ki needs pooled
    # input row 2*ph2 + ki, i.e. rows (ph2 + ki//2) of parity group p1[ki % 2]
    # -> contiguous row slices (p1 rows are ordered (j, b)).
    parts2 = []
    for ki in range(6):
        j0 = ki // 2
        parts2.append(p1[ki % 2][j0 * tb:(j0 + 4) * tb, :])        # (4*tb, 128)
    xk2 = jnp.concatenate(parts2, axis=-1)                         # (4*tb, 768)
    a2 = jnp.dot(xk2, w2_ref[...], preferred_element_type=f32)     # (4*tb, 512)
    m2 = jnp.maximum(jnp.maximum(a2[:, 0:128], a2[:, 128:256]),
                     jnp.maximum(a2[:, 256:384], a2[:, 384:512]))
    p2 = jnp.maximum(m2 + b2_ref[...], 0.0)                        # (4*tb, 128)

    # ---- flatten: four lane-tile-aligned 128-lane blocks (one per output h) -
    flat = jnp.concatenate([p2[h * tb:(h + 1) * tb, :] for h in range(4)],
                           axis=-1)                                # (tb, 512)

    # ---- fc1 + relu (dropout = identity), fc2; N padded to 128 lanes --------
    h1 = jnp.maximum(
        jnp.dot(flat, wf1_ref[...], preferred_element_type=f32) + bf1_ref[...],
        0.0)                                                       # (tb, 128)
    out_ref[...] = (jnp.dot(h1, wf2_ref[...], preferred_element_type=f32)
                    + bf2_ref[...])                                # lane-dense


# ----------------------------------------------------------------------------
# One-time host-side weight packing (pure numpy; NOT traced per forward call)
# ----------------------------------------------------------------------------
def _pooled_band_matrix(w, in_w, out_w, lane_in, lane_out=128):
    """Conv-as-matmul weights with both 2x2 pool parities folded in.

    Rows:    ki * lane_in  + wi * Cin  + ci      (ki = 0..5 vertical shift)
    Columns: (2*he + we) * lane_out + ow * Cout + co
    Entry:   w[co, ci, ki - he, wi - (2*ow + we)] when both kernel indices are
             valid; zero otherwise (incl. lane-padding rows/columns).
    """
    c_out, c_in, KH, KW = w.shape
    mat = np.zeros((6 * lane_in, 4 * lane_out), np.float32)
    for he in range(2):
        for we in range(2):
            blk = 2 * he + we
            for ki in range(6):
                kh = ki - he
                if not (0 <= kh < KH):
                    continue
                for ow in range(out_w):
                    for kw in range(KW):
                        wi = 2 * ow + we + kw
                        if wi >= in_w:
                            continue
                        rows = ki * lane_in + wi * c_in + np.arange(c_in)
                        cols = blk * lane_out + ow * c_out + np.arange(c_out)
                        mat[np.ix_(rows, cols)] = w[:, :, kh, kw].T
    return mat


def pack_params(params):
    """Pack PyTorch-layout parameters into the kernel's matmul operands.

    Call ONCE at init (host-side numpy); pass the result to net_forward.
    """
    f32 = np.float32
    c1w = np.asarray(params["conv1_w"], f32)        # (10, 1, 5, 5)
    c2w = np.asarray(params["conv2_w"], f32)        # (20, 10, 5, 5)
    nc = int(np.asarray(params["fc2_b"]).shape[0])

    w1 = _pooled_band_matrix(c1w, in_w=28, out_w=12, lane_in=28)   # (168, 512)
    w2 = _pooled_band_matrix(c2w, in_w=12, out_w=4, lane_in=128)   # (768, 512)

    b1 = np.zeros((1, 128), f32)
    b1[0, :120] = np.tile(np.asarray(params["conv1_b"], f32), 12)  # lane=ow*10+c
    b2 = np.zeros((1, 128), f32)
    b2[0, :80] = np.tile(np.asarray(params["conv2_b"], f32), 4)    # lane=ow*20+c

    # fc1: kernel 'flat' layout is (h, w, c) in four 128-lane blocks; PyTorch
    # flatten order is c*16 + h*4 + w.  Pad 50 output features -> 128 lanes.
    fc1_w = np.asarray(params["fc1_w"], f32)                       # (50, 320)
    wf1 = np.zeros((512, 128), f32)
    for h in range(4):
        for w_ in range(4):
            for c in range(20):
                wf1[h * 128 + w_ * 20 + c, :50] = fc1_w[:, c * 16 + h * 4 + w_]
    bf1 = np.zeros((1, 128), f32)
    bf1[0, :50] = np.asarray(params["fc1_b"], f32)

    wf2 = np.zeros((128, 128), f32)
    wf2[:50, :nc] = np.asarray(params["fc2_w"], f32).T
    bf2 = np.zeros((1, 128), f32)
    bf2[0, :nc] = np.asarray(params["fc2_b"], f32)

    return tuple(jnp.asarray(a) for a in (w1, b1, w2, b2, wf1, bf1, wf2, bf2))


def _pick_batch_tile(batch):
    # Tile cap 128 (per-step VMEM ~12 MB); multiple of 8 so the (row-group,
    # batch, col) input block stays (8,128)-friendly; >= 2 grid blocks when the
    # batch allows it so v7x's two TensorCores can split the "parallel" axis.
    half = -(-batch // 2)                     # ceil(batch / 2)
    return min(128, max(8, ((half + 7) // 8) * 8))


# ----------------------------------------------------------------------------
# Net forward (single fused pallas_call)
# ----------------------------------------------------------------------------
def net_forward(x, packed, num_classes):
    """x: (B, 28, 28) float -> logits (B, num_classes)."""
    w1, b1, w2, b2, wf1, bf1, wf2, bf2 = packed
    batch = x.shape[0]
    tb = _pick_batch_tile(batch)
    grid_n = pl.cdiv(batch, tb)
    b_pad = grid_n * tb

    xf = x.astype(jnp.float32)
    if b_pad != batch:
        xf = jnp.pad(xf, ((0, b_pad - batch), (0, 0), (0, 0)))
    # Group rows by (row mod 4) and move batch to the middle so every in-kernel
    # im2col shift (input row 4*j + offset) is a contiguous leading-dim slice.
    # New row index 7*g + s holds original row 4*s + g.
    x_w = (xf.reshape(b_pad, 7, 4, 28)
             .transpose(2, 1, 0, 3)
             .reshape(28, b_pad, 28))

    weights = (w1, b1, w2, b2, wf1, bf1, wf2, bf2)
    in_specs = [pl.BlockSpec((28, tb, 28), lambda i: (0, i, 0))]
    in_specs += [pl.BlockSpec(w.shape, lambda i: (0, 0)) for w in weights]

    out = pl.pallas_call(
        _net_fused_kernel,
        out_shape=jax.ShapeDtypeStruct((b_pad, 128), jnp.float32),
        grid=(grid_n,),
        in_specs=in_specs,
        out_specs=pl.BlockSpec((tb, 128), lambda i: (i, 0)),
        compiler_params=pltpu.CompilerParams(
            dimension_semantics=("parallel",),
            vmem_limit_bytes=48 * 1024 * 1024),
    )(x_w, *weights)

    return out[:batch, :num_classes]


# ----------------------------------------------------------------------------
# Pure-JAX reference (correctness check of the Pallas path)
# ----------------------------------------------------------------------------
def net_forward_ref(x, params):
    x = x[:, None, :, :].astype(jnp.float32)
    dn = jax.lax.conv_dimension_numbers(x.shape, params["conv1_w"].shape,
                                        ("NCHW", "OIHW", "NCHW"))
    x = jax.lax.conv_general_dilated(x, params["conv1_w"], (1, 1), "VALID",
                                     dimension_numbers=dn)
    x = x + params["conv1_b"][None, :, None, None]
    x = jnp.maximum(jax.lax.reduce_window(x, -jnp.inf, jax.lax.max,
                                          (1, 1, 2, 2), (1, 1, 2, 2), "VALID"), 0.0)
    dn2 = jax.lax.conv_dimension_numbers(x.shape, params["conv2_w"].shape,
                                         ("NCHW", "OIHW", "NCHW"))
    x = jax.lax.conv_general_dilated(x, params["conv2_w"], (1, 1), "VALID",
                                     dimension_numbers=dn2)
    x = x + params["conv2_b"][None, :, None, None]
    x = jnp.maximum(jax.lax.reduce_window(x, -jnp.inf, jax.lax.max,
                                          (1, 1, 2, 2), (1, 1, 2, 2), "VALID"), 0.0)
    x = x.reshape(x.shape[0], 320)
    x = jnp.maximum(x @ params["fc1_w"].T + params["fc1_b"], 0.0)
    x = x @ params["fc2_w"].T + params["fc2_b"]
    return x


# ----------------------------------------------------------------------------
# Deterministic parameter init
# ----------------------------------------------------------------------------
def init_params(output_classes=10, seed=0):
    keys = jax.random.split(jax.random.PRNGKey(seed), 8)
    return {
        "conv1_w": 0.1 * jax.random.normal(keys[0], (10, 1, 5, 5), jnp.float32),
        "conv1_b": 0.1 * jax.random.normal(keys[1], (10,), jnp.float32),
        "conv2_w": 0.1 * jax.random.normal(keys[2], (20, 10, 5, 5), jnp.float32),
        "conv2_b": 0.1 * jax.random.normal(keys[3], (20,), jnp.float32),
        "fc1_w": 0.05 * jax.random.normal(keys[4], (50, 320), jnp.float32),
        "fc1_b": 0.05 * jax.random.normal(keys[5], (50,), jnp.float32),
        "fc2_w": 0.1 * jax.random.normal(keys[6], (output_classes, 50), jnp.float32),
        "fc2_b": 0.1 * jax.random.normal(keys[7], (output_classes,), jnp.float32),
    }


if __name__ == "__main__":
    batch, output_classes = 2, 10
    params = init_params(output_classes)
    packed = pack_params(params)            # one-time host-side packing
    x = jax.random.normal(jax.random.PRNGKey(0), (batch, 28, 28), jnp.float32)

    fwd = jax.jit(net_forward, static_argnames="num_classes")
    out = jax.block_until_ready(fwd(x, packed, num_classes=output_classes))
    assert out.shape == (batch, output_classes), out.shape

    ref = jax.block_until_ready(net_forward_ref(x, params))
    max_err = float(jnp.max(jnp.abs(out - ref)))
    assert jnp.allclose(out, ref, atol=5e-4, rtol=5e-4), max_err

    print("KERNEL_OK")
</pallas_src>

<mosaic_0001>
module attributes {stable_mosaic.version = 11 : i64} {
  func.func @_net_fused_kernel(%arg0: i32, %arg1: memref<28x8x28xf32, #tpu.memory_space<vmem>>, %arg2: memref<168x512xf32, #tpu.memory_space<vmem>>, %arg3: memref<1x128xf32, #tpu.memory_space<vmem>>, %arg4: memref<768x512xf32, #tpu.memory_space<vmem>>, %arg5: memref<1x128xf32, #tpu.memory_space<vmem>>, %arg6: memref<512x128xf32, #tpu.memory_space<vmem>>, %arg7: memref<1x128xf32, #tpu.memory_space<vmem>>, %arg8: memref<128x128xf32, #tpu.memory_space<vmem>>, %arg9: memref<1x128xf32, #tpu.memory_space<vmem>>, %arg10: memref<8x128xf32, #tpu.memory_space<vmem>>) attributes {dimension_semantics = [#tpu.dimension_semantics<parallel>], iteration_bounds = array<i64: 1>, scalar_prefetch = 0 : i64, scratch_operands = 0 : i64, tpu.core_type = #tpu.core_type<tc>, window_params = [{transform_indices = @transform_0, window_bounds = array<i64: 28, 8, 28>}, {pipeline_mode = #tpu.pipeline_mode<synchronous>, transform_indices = @transform_1, window_bounds = array<i64: 168, 512>}, {pipeline_mode = #tpu.pipeline_mode<synchronous>, transform_indices = @transform_2, window_bounds = array<i64: 1, 128>}, {pipeline_mode = #tpu.pipeline_mode<synchronous>, transform_indices = @transform_3, window_bounds = array<i64: 768, 512>}, {pipeline_mode = #tpu.pipeline_mode<synchronous>, transform_indices = @transform_4, window_bounds = array<i64: 1, 128>}, {pipeline_mode = #tpu.pipeline_mode<synchronous>, transform_indices = @transform_5, window_bounds = array<i64: 512, 128>}, {pipeline_mode = #tpu.pipeline_mode<synchronous>, transform_indices = @transform_6, window_bounds = array<i64: 1, 128>}, {pipeline_mode = #tpu.pipeline_mode<synchronous>, transform_indices = @transform_7, window_bounds = array<i64: 128, 128>}, {pipeline_mode = #tpu.pipeline_mode<synchronous>, transform_indices = @transform_8, window_bounds = array<i64: 1, 128>}, {transform_indices = @transform_9, window_bounds = array<i64: 8, 128>}]} {
    %c0 = arith.constant 0 : index
    %c0_0 = arith.constant 0 : index
    %c0_1 = arith.constant 0 : index
    %0 = vector.load %arg1[%c0, %c0_0, %c0_1] : memref<28x8x28xf32, #tpu.memory_space<vmem>>, vector<28x8x28xf32>
    %c0_2 = arith.constant 0 : index
    %c0_3 = arith.constant 0 : index
    %1 = vector.load %arg2[%c0_2, %c0_3] : memref<168x512xf32, #tpu.memory_space<vmem>>, vector<168x512xf32>
    %2 = vector.extract_strided_slice %0 {offsets = [0, 0, 0], sizes = [6, 8, 28], strides = [1, 1, 1]} : vector<28x8x28xf32> to vector<6x8x28xf32>
    %3 = vector.shape_cast %2 : vector<6x8x28xf32> to vector<48x28xf32>
    %4 = vector.extract_strided_slice %0 {offsets = [7, 0, 0], sizes = [6, 8, 28], strides = [1, 1, 1]} : vector<28x8x28xf32> to vector<6x8x28xf32>
    %5 = vector.shape_cast %4 : vector<6x8x28xf32> to vector<48x28xf32>
    %6 = vector.extract_strided_slice %0 {offsets = [14, 0, 0], sizes = [6, 8, 28], strides = [1, 1, 1]} : vector<28x8x28xf32> to vector<6x8x28xf32>
    %7 = vector.shape_cast %6 : vector<6x8x28xf32> to vector<48x28xf32>
    %8 = vector.extract_strided_slice %0 {offsets = [21, 0, 0], sizes = [6, 8, 28], strides = [1, 1, 1]} : vector<28x8x28xf32> to vector<6x8x28xf32>
    %9 = vector.shape_cast %8 : vector<6x8x28xf32> to vector<48x28xf32>
    %10 = vector.extract_strided_slice %0 {offsets = [1, 0, 0], sizes = [6, 8, 28], strides = [1, 1, 1]} : vector<28x8x28xf32> to vector<6x8x28xf32>
    %11 = vector.shape_cast %10 : vector<6x8x28xf32> to vector<48x28xf32>
    %12 = vector.extract_strided_slice %0 {offsets = [8, 0, 0], sizes = [6, 8, 28], strides = [1, 1, 1]} : vector<28x8x28xf32> to vector<6x8x28xf32>
    %13 = vector.shape_cast %12 : vector<6x8x28xf32> to vector<48x28xf32>
    %14 = tpu.concatenate %3, %5, %7, %9, %11, %13 in 1 : vector<48x28xf32>, vector<48x28xf32>, vector<48x28xf32>, vector<48x28xf32>, vector<48x28xf32>, vector<48x28xf32> -> vector<48x168xf32>
    %cst = arith.constant dense<0.000000e+00> : vector<48x512xf32>
    %15 = tpu.matmul %14, %1, %cst {dimension_numbers = #tpu.dot_dimension_numbers<[1], [0], [0], [1], [0, 0, 1, 1], [], []>} : vector<48x168xf32>, vector<168x512xf32>, vector<48x512xf32> -> vector<48x512xf32>
    %16 = vector.extract_strided_slice %15 {offsets = [0, 0], sizes = [48, 128], strides = [1, 1]} : vector<48x512xf32> to vector<48x128xf32>
    %17 = vector.extract_strided_slice %15 {offsets = [0, 128], sizes = [48, 128], strides = [1, 1]} : vector<48x512xf32> to vector<48x128xf32>
    %18 = arith.maximumf %16, %17 : vector<48x128xf32>
    %19 = vector.extract_strided_slice %15 {offsets = [0, 256], sizes = [48, 128], strides = [1, 1]} : vector<48x512xf32> to vector<48x128xf32>
    %20 = vector.extract_strided_slice %15 {offsets = [0, 384], sizes = [48, 128], strides = [1, 1]} : vector<48x512xf32> to vector<48x128xf32>
    %21 = arith.maximumf %19, %20 : vector<48x128xf32>
    %22 = arith.maximumf %18, %21 : vector<48x128xf32>
    %c0_4 = arith.constant 0 : index
    %c0_5 = arith.constant 0 : index
    %23 = vector.load %arg3[%c0_4, %c0_5] : memref<1x128xf32, #tpu.memory_space<vmem>>, vector<1x128xf32>
    %24 = vector.broadcast %23 : vector<1x128xf32> to vector<48x128xf32>
    %25 = arith.addf %22, %24 : vector<48x128xf32>
    %cst_6 = arith.constant 0.000000e+00 : f32
    %26 = vector.broadcast %cst_6 : f32 to vector<48x128xf32>
    %27 = arith.maximumf %25, %26 : vector<48x128xf32>
    %28 = vector.extract_strided_slice %0 {offsets = [14, 0, 0], sizes = [6, 8, 28], strides = [1, 1, 1]} : vector<28x8x28xf32> to vector<6x8x28xf32>
    %29 = vector.shape_cast %28 : vector<6x8x28xf32> to vector<48x28xf32>
    %30 = vector.extract_strided_slice %0 {offsets = [21, 0, 0], sizes = [6, 8, 28], strides = [1, 1, 1]} : vector<28x8x28xf32> to vector<6x8x28xf32>
    %31 = vector.shape_cast %30 : vector<6x8x28xf32> to vector<48x28xf32>
    %32 = vector.extract_strided_slice %0 {offsets = [1, 0, 0], sizes = [6, 8, 28], strides = [1, 1, 1]} : vector<28x8x28xf32> to vector<6x8x28xf32>
    %33 = vector.shape_cast %32 : vector<6x8x28xf32> to vector<48x28xf32>
    %34 = vector.extract_strided_slice %0 {offsets = [8, 0, 0], sizes = [6, 8, 28], strides = [1, 1, 1]} : vector<28x8x28xf32> to vector<6x8x28xf32>
    %35 = vector.shape_cast %34 : vector<6x8x28xf32> to vector<48x28xf32>
    %36 = vector.extract_strided_slice %0 {offsets = [15, 0, 0], sizes = [6, 8, 28], strides = [1, 1, 1]} : vector<28x8x28xf32> to vector<6x8x28xf32>
    %37 = vector.shape_cast %36 : vector<6x8x28xf32> to vector<48x28xf32>
    %38 = vector.extract_strided_slice %0 {offsets = [22, 0, 0], sizes = [6, 8, 28], strides = [1, 1, 1]} : vector<28x8x28xf32> to vector<6x8x28xf32>
    %39 = vector.shape_cast %38 : vector<6x8x28xf32> to vector<48x28xf32>
    %40 = tpu.concatenate %29, %31, %33, %35, %37, %39 in 1 : vector<48x28xf32>, vector<48x28xf32>, vector<48x28xf32>, vector<48x28xf32>, vector<48x28xf32>, vector<48x28xf32> -> vector<48x168xf32>
    %cst_7 = arith.constant dense<0.000000e+00> : vector<48x512xf32>
    %41 = tpu.matmul %40, %1, %cst_7 {dimension_numbers = #tpu.dot_dimension_numbers<[1], [0], [0], [1], [0, 0, 1, 1], [], []>} : vector<48x168xf32>, vector<168x512xf32>, vector<48x512xf32> -> vector<48x512xf32>
    %42 = vector.extract_strided_slice %41 {offsets = [0, 0], sizes = [48, 128], strides = [1, 1]} : vector<48x512xf32> to vector<48x128xf32>
    %43 = vector.extract_strided_slice %41 {offsets = [0, 128], sizes = [48, 128], strides = [1, 1]} : vector<48x512xf32> to vector<48x128xf32>
    %44 = arith.maximumf %42, %43 : vector<48x128xf32>
    %45 = vector.extract_strided_slice %41 {offsets = [0, 256], sizes = [48, 128], strides = [1, 1]} : vector<48x512xf32> to vector<48x128xf32>
    %46 = vector.extract_strided_slice %41 {offsets = [0, 384], sizes = [48, 128], strides = [1, 1]} : vector<48x512xf32> to vector<48x128xf32>
    %47 = arith.maximumf %45, %46 : vector<48x128xf32>
    %48 = arith.maximumf %44, %47 : vector<48x128xf32>
    %c0_8 = arith.constant 0 : index
    %c0_9 = arith.constant 0 : index
    %49 = vector.load %arg3[%c0_8, %c0_9] : memref<1x128xf32, #tpu.memory_space<vmem>>, vector<1x128xf32>
    %50 = vector.broadcast %49 : vector<1x128xf32> to vector<48x128xf32>
    %51 = arith.addf %48, %50 : vector<48x128xf32>
    %cst_10 = arith.constant 0.000000e+00 : f32
    %52 = vector.broadcast %cst_10 : f32 to vector<48x128xf32>
    %53 = arith.maximumf %51, %52 : vector<48x128xf32>
    %54 = vector.extract_strided_slice %27 {offsets = [0, 0], sizes = [32, 128], strides = [1, 1]} : vector<48x128xf32> to vector<32x128xf32>
    %55 = vector.extract_strided_slice %53 {offsets = [0, 0], sizes = [32, 128], strides = [1, 1]} : vector<48x128xf32> to vector<32x128xf32>
    %56 = vector.extract_strided_slice %27 {offsets = [8, 0], sizes = [32, 128], strides = [1, 1]} : vector<48x128xf32> to vector<32x128xf32>
    %57 = vector.extract_strided_slice %53 {offsets = [8, 0], sizes = [32, 128], strides = [1, 1]} : vector<48x128xf32> to vector<32x128xf32>
    %58 = vector.extract_strided_slice %27 {offsets = [16, 0], sizes = [32, 128], strides = [1, 1]} : vector<48x128xf32> to vector<32x128xf32>
    %59 = vector.extract_strided_slice %53 {offsets = [16, 0], sizes = [32, 128], strides = [1, 1]} : vector<48x128xf32> to vector<32x128xf32>
    %60 = tpu.concatenate %54, %55, %56, %57, %58, %59 in 1 : vector<32x128xf32>, vector<32x128xf32>, vector<32x128xf32>, vector<32x128xf32>, vector<32x128xf32>, vector<32x128xf32> -> vector<32x768xf32>
    %c0_11 = arith.constant 0 : index
    %c0_12 = arith.constant 0 : index
    %61 = vector.load %arg4[%c0_11, %c0_12] : memref<768x512xf32, #tpu.memory_space<vmem>>, vector<768x512xf32>
    %cst_13 = arith.constant dense<0.000000e+00> : vector<32x512xf32>
    %62 = tpu.matmul %60, %61, %cst_13 {dimension_numbers = #tpu.dot_dimension_numbers<[1], [0], [0], [1], [0, 0, 1, 1], [], []>} : vector<32x768xf32>, vector<768x512xf32>, vector<32x512xf32> -> vector<32x512xf32>
    %63 = vector.extract_strided_slice %62 {offsets = [0, 0], sizes = [32, 128], strides = [1, 1]} : vector<32x512xf32> to vector<32x128xf32>
    %64 = vector.extract_strided_slice %62 {offsets = [0, 128], sizes = [32, 128], strides = [1, 1]} : vector<32x512xf32> to vector<32x128xf32>
    %65 = arith.maximumf %63, %64 : vector<32x128xf32>
    %66 = vector.extract_strided_slice %62 {offsets = [0, 256], sizes = [32, 128], strides = [1, 1]} : vector<32x512xf32> to vector<32x128xf32>
    %67 = vector.extract_strided_slice %62 {offsets = [0, 384], sizes = [32, 128], strides = [1, 1]} : vector<32x512xf32> to vector<32x128xf32>
    %68 = arith.maximumf %66, %67 : vector<32x128xf32>
    %69 = arith.maximumf %65, %68 : vector<32x128xf32>
    %c0_14 = arith.constant 0 : index
    %c0_15 = arith.constant 0 : index
    %70 = vector.load %arg5[%c0_14, %c0_15] : memref<1x128xf32, #tpu.memory_space<vmem>>, vector<1x128xf32>
    %71 = vector.broadcast %70 : vector<1x128xf32> to vector<32x128xf32>
    %72 = arith.addf %69, %71 : vector<32x128xf32>
    %cst_16 = arith.constant 0.000000e+00 : f32
    %73 = vector.broadcast %cst_16 : f32 to vector<32x128xf32>
    %74 = arith.maximumf %72, %73 : vector<32x128xf32>
    %75 = vector.extract_strided_slice %74 {offsets = [0, 0], sizes = [8, 128], strides = [1, 1]} : vector<32x128xf32> to vector<8x128xf32>
    %76 = vector.extract_strided_slice %74 {offsets = [8, 0], sizes = [8, 128], strides = [1, 1]} : vector<32x128xf32> to vector<8x128xf32>
    %77 = vector.extract_strided_slice %74 {offsets = [16, 0], sizes = [8, 128], strides = [1, 1]} : vector<32x128xf32> to vector<8x128xf32>
    %78 = vector.extract_strided_slice %74 {offsets = [24, 0], sizes = [8, 128], strides = [1, 1]} : vector<32x128xf32> to vector<8x128xf32>
    %79 = tpu.concatenate %75, %76, %77, %78 in 1 : vector<8x128xf32>, vector<8x128xf32>, vector<8x128xf32>, vector<8x128xf32> -> vector<8x512xf32>
    %c0_17 = arith.constant 0 : index
    %c0_18 = arith.constant 0 : index
    %80 = vector.load %arg6[%c0_17, %c0_18] : memref<512x128xf32, #tpu.memory_space<vmem>>, vector<512x128xf32>
    %cst_19 = arith.constant dense<0.000000e+00> : vector<8x128xf32>
    %81 = tpu.matmul %79, %80, %cst_19 {dimension_numbers = #tpu.dot_dimension_numbers<[1], [0], [0], [1], [0, 0, 1, 1], [], []>} : vector<8x512xf32>, vector<512x128xf32>, vector<8x128xf32> -> vector<8x128xf32>
    %c0_20 = arith.constant 0 : index
    %c0_21 = arith.constant 0 : index
    %82 = vector.load %arg7[%c0_20, %c0_21] : memref<1x128xf32, #tpu.memory_space<vmem>>, vector<1x128xf32>
    %83 = vector.broadcast %82 : vector<1x128xf32> to vector<8x128xf32>
    %84 = arith.addf %81, %83 : vector<8x128xf32>
    %cst_22 = arith.constant 0.000000e+00 : f32
    %85 = vector.broadcast %cst_22 : f32 to vector<8x128xf32>
    %86 = arith.maximumf %84, %85 : vector<8x128xf32>
    %c0_23 = arith.constant 0 : index
    %c0_24 = arith.constant 0 : index
    %87 = vector.load %arg8[%c0_23, %c0_24] : memref<128x128xf32, #tpu.memory_space<vmem>>, vector<128x128xf32>
    %cst_25 = arith.constant dense<0.000000e+00> : vector<8x128xf32>
    %88 = tpu.matmul %86, %87, %cst_25 {dimension_numbers = #tpu.dot_dimension_numbers<[1], [0], [0], [1], [0, 0, 1, 1], [], []>} : vector<8x128xf32>, vector<128x128xf32>, vector<8x128xf32> -> vector<8x128xf32>
    %c0_26 = arith.constant 0 : index
    %c0_27 = arith.constant 0 : index
    %89 = vector.load %arg9[%c0_26, %c0_27] : memref<1x128xf32, #tpu.memory_space<vmem>>, vector<1x128xf32>
    %90 = vector.broadcast %89 : vector<1x128xf32> to vector<8x128xf32>
    %91 = arith.addf %88, %90 : vector<8x128xf32>
    %c0_28 = arith.constant 0 : index
    %c0_29 = arith.constant 0 : index
    %92 = vector.load %arg10[%c0_28, %c0_29] : memref<8x128xf32, #tpu.memory_space<vmem>>, vector<8x128xf32>
    tpu.vector_store %arg10[%c0_28, %c0_29], %91 {strides = array<i32>} : memref<8x128xf32, #tpu.memory_space<vmem>>, vector<8x128xf32>,
    return
  }
  func.func @transform_0(%arg0: i32) -> (i32, i32, i32) {
    %c0_i32 = arith.constant 0 : i32
    %c0_i32_0 = arith.constant 0 : i32
    %c0_i32_1 = arith.constant 0 : i32
    return %c0_i32, %arg0, %c0_i32_0 : i32, i32, i32
  }
  func.func @transform_1(%arg0: i32) -> (i32, i32) {
    %c0_i32 = arith.constant 0 : i32
    %c0_i32_0 = arith.constant 0 : i32
    %c0_i32_1 = arith.constant 0 : i32
    return %c0_i32, %c0_i32_0 : i32, i32
  }
  func.func @transform_2(%arg0: i32) -> (i32, i32) {
    %c0_i32 = arith.constant 0 : i32
    %c0_i32_0 = arith.constant 0 : i32
    %c0_i32_1 = arith.constant 0 : i32
    return %c0_i32, %c0_i32_0 : i32, i32
  }
  func.func @transform_3(%arg0: i32) -> (i32, i32) {
    %c0_i32 = arith.constant 0 : i32
    %c0_i32_0 = arith.constant 0 : i32
    %c0_i32_1 = arith.constant 0 : i32
    return %c0_i32, %c0_i32_0 : i32, i32
  }
  func.func @transform_4(%arg0: i32) -> (i32, i32) {
    %c0_i32 = arith.constant 0 : i32
    %c0_i32_0 = arith.constant 0 : i32
    %c0_i32_1 = arith.constant 0 : i32
    return %c0_i32, %c0_i32_0 : i32, i32
  }
  func.func @transform_5(%arg0: i32) -> (i32, i32) {
    %c0_i32 = arith.constant 0 : i32
    %c0_i32_0 = arith.constant 0 : i32
    %c0_i32_1 = arith.constant 0 : i32
    return %c0_i32, %c0_i32_0 : i32, i32
  }
  func.func @transform_6(%arg0: i32) -> (i32, i32) {
    %c0_i32 = arith.constant 0 : i32
    %c0_i32_0 = arith.constant 0 : i32
    %c0_i32_1 = arith.constant 0 : i32
    return %c0_i32, %c0_i32_0 : i32, i32
  }
  func.func @transform_7(%arg0: i32) -> (i32, i32) {
    %c0_i32 = arith.constant 0 : i32
    %c0_i32_0 = arith.constant 0 : i32
    %c0_i32_1 = arith.constant 0 : i32
    return %c0_i32, %c0_i32_0 : i32, i32
  }
  func.func @transform_8(%arg0: i32) -> (i32, i32) {
    %c0_i32 = arith.constant 0 : i32
    %c0_i32_0 = arith.constant 0 : i32
    %c0_i32_1 = arith.constant 0 : i32
    return %c0_i32, %c0_i32_0 : i32, i32
  }
  func.func @transform_9(%arg0: i32) -> (i32, i32) {
    %c0_i32 = arith.constant 0 : i32
    %c0_i32_0 = arith.constant 0 : i32
    return %arg0, %c0_i32 : i32, i32
  }
}

</mosaic_0001>

<llo_original>
// kernel: net_forward.1
$region0: #{net_forward.1}
  #allocation0 [shape = 'u32[]', space=smem, size = 0x4, offset = 0x4, fixed_abs, tag = 'smem constant byte address 0x4 - core index']
  #allocation1 [shape = 'u32[144,128]{1,0:T(1,128)}', space=vmem, size = 0x12000, scoped, tag = 'internal scratch']
  %s0 = inlined_call_operand.vmem [shape: f32[28,8,28], index: 0, kind: input, shape index: {}]
  %s1 = inlined_call_operand.hbm [shape: f32[168,512], index: 1, kind: input, shape index: {}]
  %s2 = inlined_call_operand.hbm [shape: f32[1,128], index: 2, kind: input, shape index: {}]
  %s3 = inlined_call_operand.hbm [shape: f32[768,512], index: 3, kind: input, shape index: {}]
  %s4 = inlined_call_operand.hbm [shape: f32[1,128], index: 4, kind: input, shape index: {}]
  %s5 = inlined_call_operand.hbm [shape: f32[512,128], index: 5, kind: input, shape index: {}]
  %s6 = inlined_call_operand.hbm [shape: f32[1,128], index: 6, kind: input, shape index: {}]
  %s7 = inlined_call_operand.hbm [shape: f32[128,128], index: 7, kind: input, shape index: {}]
  %s8 = inlined_call_operand.hbm [shape: f32[1,128], index: 8, kind: input, shape index: {}]
  %s9 = inlined_call_operand.vmem [shape: f32[8,128], index: 9, kind: output, shape index: {}]
  %s10 = sld [smem:[#allocation0]]
  $region78: #{net_forward.1} parent=0
    _
  %s12 = ssub.s32 1, %s10
  %s13 = scalar_select 0, %s12, %s10
  $region1: #{net_forward.1} parent=0
    #allocation2 [shape = 'u8[344064]{0}', space=vmem, size = 0x54000, scoped, tag = 'input window, operand 1, single buffered']
    #allocation3 [shape = 's32[1]{0}', space=sflag, size = 0x4, scoped, tag = 'scoped memory for net_forward.1']
    #allocation4 [shape = 'u8[512]{0}', space=vmem, size = 0x400, scoped, tag = 'input window, operand 2, single buffered']
    #allocation5 [shape = 's32[1]{0}', space=sflag, size = 0x4, scoped, tag = 'scoped memory for net_forward.1']
    #allocation6 [shape = 'u8[1572864]{0}', space=vmem, size = 0x180000, scoped, tag = 'input window, operand 3, single buffered']
    #allocation7 [shape = 'u8[512]{0}', space=vmem, size = 0x400, scoped, tag = 'input window, operand 4, single buffered']
    #allocation8 [shape = 's32[1]{0}', space=sflag, size = 0x4, scoped, tag = 'scoped memory for net_forward.1']
    #allocation9 [shape = 'u8[262144]{0}', space=vmem, size = 0x40000, scoped, tag = 'input window, operand 5, single buffered']
    #allocation10 [shape = 'u8[512]{0}', space=vmem, size = 0x400, scoped, tag = 'input window, operand 6, single buffered']
    #allocation11 [shape = 's32[1]{0}', space=sflag, size = 0x4, scoped, tag = 'scoped memory for net_forward.1']
    #allocation12 [shape = 'u8[65536]{0}', space=vmem, size = 0x10000, scoped, tag = 'input window, operand 7, single buffered']
    #allocation13 [shape = 'u8[512]{0}', space=vmem, size = 0x400, scoped, tag = 'input window, operand 8, single buffered']
    #allocation14 [shape = 's32[1]{0}', space=sflag, size = 0x4, scoped, tag = 'scoped memory for net_forward.1']
    %14 = vsyncpa [#allocation3], 0
    %15 = vsyncpa [#allocation5], 0
    %16 = vsyncpa [#allocation8], 0
    %17 = vsyncpa [#allocation11], 0
    %18 = vsyncpa [#allocation14], 0
    // Predicated region
    $region2: #{net_forward.1} parent=1 // pred_check
      _
    $region3: #{net_forward.1} parent=1 // pred_check_branch
      %20 = sbr.rel (0) target = $region5
    $region4: #{net_forward.1} parent=1 // pred_region
      _
    $region5: #{net_forward.1} parent=1 // pred_fallthru
      _
    // Predicated region
    $region6: #{net_forward.1} parent=1 // pred_check
      _
    $region7: #{net_forward.1} parent=1 // pred_check_branch
      %22 = sbr.rel (0) target = $region9
    $region8: #{net_forward.1} parent=1 // pred_region
      %s24 = ssub.s32 10752, 10752
      %25 = vsyncadd [#allocation3], %s24
      %s26 = sshll.u32 [#allocation2], 4
      %s27 = int_to_ptr.vmem [resolvable:$true] %s26
      %32 = dma.hbm_to_vmem [thread:$0]  %s1, 10752, %s27, [#allocation3], 512, 512, 32
    $region9: #{net_forward.1} parent=1 // pred_fallthru
      _
    // Predicated region
    $region10: #{net_forward.1} parent=1 // pred_check
      _
    $region11: #{net_forward.1} parent=1 // pred_check_branch
      %34 = sbr.rel (0) target = $region13
    $region12: #{net_forward.1} parent=1 // pred_region
      %s36 = ssub.s32 16, 16
      %37 = vsyncadd [#allocation5], %s36
      %s39 = sshll.u32 [#allocation4], 4
      %s40 = int_to_ptr.vmem [resolvable:$true] %s39
      %42 = dma.hbm_to_vmem [thread:$0]  %s2, 16, %s40, [#allocation5]
    $region13: #{net_forward.1} parent=1 // pred_fallthru
      _
    // Predicated region
    $region14: #{net_forward.1} parent=1 // pred_check
      _
    $region15: #{net_forward.1} parent=1 // pred_check_branch
      %44 = sbr.rel (0) target = $region17
    $region16: #{net_forward.1} parent=1 // pred_region
      %s46 = ssub.s32 49152, 49152
      %47 = vsyncadd [#allocation5], %s46
      %s48 = sshll.u32 [#allocation6], 4
      %s49 = int_to_ptr.vmem [resolvable:$true] %s48
      %54 = dma.hbm_to_vmem [thread:$0]  %s3, 49152, %s49, [#allocation5], 512, 512, 32
    $region17: #{net_forward.1} parent=1 // pred_fallthru
      _
    // Predicated region
    $region18: #{net_forward.1} parent=1 // pred_check
      _
    $region19: #{net_forward.1} parent=1 // pred_check_branch
      %56 = sbr.rel (0) target = $region21
    $region20: #{net_forward.1} parent=1 // pred_region
      %s58 = ssub.s32 16, 16
      %59 = vsyncadd [#allocation8], %s58
      %s61 = sshll.u32 [#allocation7], 4
      %s62 = int_to_ptr.vmem [resolvable:$true] %s61
      %64 = dma.hbm_to_vmem [thread:$0]  %s4, 16, %s62, [#allocation8]
    $region21: #{net_forward.1} parent=1 // pred_fallthru
      _
    // Predicated region
    $region22: #{net_forward.1} parent=1 // pred_check
      _
    $region23: #{net_forward.1} parent=1 // pred_check_branch
      %66 = sbr.rel (0) target = $region25
    $region24: #{net_forward.1} parent=1 // pred_region
      %s68 = ssub.s32 8192, 8192
      %69 = vsyncadd [#allocation8], %s68
      %s70 = sshll.u32 [#allocation9], 4
      %s71 = int_to_ptr.vmem [resolvable:$true] %s70
      %76 = dma.hbm_to_vmem [thread:$0]  %s5, 8192, %s71, [#allocation8], 128, 128, 8
    $region25: #{net_forward.1} parent=1 // pred_fallthru
      _
    // Predicated region
    $region26: #{net_forward.1} parent=1 // pred_check
      _
    $region27: #{net_forward.1} parent=1 // pred_check_branch
      %78 = sbr.rel (0) target = $region29
    $region28: #{net_forward.1} parent=1 // pred_region
      %s80 = ssub.s32 16, 16
      %81 = vsyncadd [#allocation11], %s80
      %s83 = sshll.u32 [#allocation10], 4
      %s84 = int_to_ptr.vmem [resolvable:$true] %s83
      %86 = dma.hbm_to_vmem [thread:$0]  %s6, 16, %s84, [#allocation11]
    $region29: #{net_forward.1} parent=1 // pred_fallthru
      _
    // Predicated region
    $region30: #{net_forward.1} parent=1 // pred_check
      _
    $region31: #{net_forward.1} parent=1 // pred_check_branch
      %88 = sbr.rel (0) target = $region33
    $region32: #{net_forward.1} parent=1 // pred_region
      %s90 = ssub.s32 2048, 2048
      %91 = vsyncadd [#allocation11], %s90
      %s92 = sshll.u32 [#allocation12], 4
      %s93 = int_to_ptr.vmem [resolvable:$true] %s92
      %98 = dma.hbm_to_vmem [thread:$0]  %s7, 2048, %s93, [#allocation11], 128, 128, 8
    $region33: #{net_forward.1} parent=1 // pred_fallthru
      _
    // Predicated region
    $region34: #{net_forward.1} parent=1 // pred_check
      _
    $region35: #{net_forward.1} parent=1 // pred_check_branch
      %100 = sbr.rel (0) target = $region37
    $region36: #{net_forward.1} parent=1 // pred_region
      %s102 = ssub.s32 16, 16
      %103 = vsyncadd [#allocation14], %s102
      %s105 = sshll.u32 [#allocation13], 4
      %s106 = int_to_ptr.vmem [resolvable:$true] %s105
      %108 = dma.hbm_to_vmem [thread:$0]  %s8, 16, %s106, [#allocation14]
    $region37: #{net_forward.1} parent=1 // pred_fallthru
      _
    // Predicated region
    $region38: #{net_forward.1} parent=1 // pred_check
      _
    $region39: #{net_forward.1} parent=1 // pred_check_branch
      %110 = sbr.rel (0) target = $region41
    $region40: #{net_forward.1} parent=1 // pred_region
      %111 = dma.done [#allocation3], 10752
    $region41: #{net_forward.1} parent=1 // pred_fallthru
      _
    // Predicated region
    $region42: #{net_forward.1} parent=1 // pred_check
      _
    $region43: #{net_forward.1} parent=1 // pred_check_branch
      %113 = sbr.rel (0) target = $region45
    $region44: #{net_forward.1} parent=1 // pred_region
      %114 = dma.done [#allocation5], 16
    $region45: #{net_forward.1} parent=1 // pred_fallthru
      _
    // Predicated region
    $region46: #{net_forward.1} parent=1 // pred_check
      _
    $region47: #{net_forward.1} parent=1 // pred_check_branch
      %116 = sbr.rel (0) target = $region49
    $region48: #{net_forward.1} parent=1 // pred_region
      %117 = dma.done [#allocation5], 49152
    $region49: #{net_forward.1} parent=1 // pred_fallthru
      _
    // Predicated region
    $region50: #{net_forward.1} parent=1 // pred_check
      _
    $region51: #{net_forward.1} parent=1 // pred_check_branch
      %119 = sbr.rel (0) target = $region53
    $region52: #{net_forward.1} parent=1 // pred_region
      %120 = dma.done [#allocation8], 16
    $region53: #{net_forward.1} parent=1 // pred_fallthru
      _
    // Predicated region
    $region54: #{net_forward.1} parent=1 // pred_check
      _
    $region55: #{net_forward.1} parent=1 // pred_check_branch
      %122 = sbr.rel (0) target = $region57
    $region56: #{net_forward.1} parent=1 // pred_region
      %123 = dma.done [#allocation8], 8192
    $region57: #{net_forward.1} parent=1 // pred_fallthru
      _
    // Predicated region
    $region58: #{net_forward.1} parent=1 // pred_check
      _
    $region59: #{net_forward.1} parent=1 // pred_check_branch
      %125 = sbr.rel (0) target = $region61
    $region60: #{net_forward.1} parent=1 // pred_region
      %126 = dma.done [#allocation11], 16
    $region61: #{net_forward.1} parent=1 // pred_fallthru
      _
    // Predicated region
    $region62: #{net_forward.1} parent=1 // pred_check
      _
    $region63: #{net_forward.1} parent=1 // pred_check_branch
      %128 = sbr.rel (0) target = $region65
    $region64: #{net_forward.1} parent=1 // pred_region
      %129 = dma.done [#allocation11], 2048
    $region65: #{net_forward.1} parent=1 // pred_fallthru
      _
    // Predicated region
    $region66: #{net_forward.1} parent=1 // pred_check
      _
    $region67: #{net_forward.1} parent=1 // pred_check_branch
      %131 = sbr.rel (0) target = $region69
    $region68: #{net_forward.1} parent=1 // pred_region
      %132 = dma.done [#allocation14], 16
    $region69: #{net_forward.1} parent=1 // pred_fallthru
      _
    %v133 = vld [vmem:[%s0] sm:$0xff]
    %v134 = vld [vmem:[%s0 + $0x8] sm:$0xff]
    %v135 = vld [vmem:[%s0 + $0x10] sm:$0xff]
    %v136 = vld [vmem:[%s0 + $0x18] sm:$0xff]
    %v137 = vld [vmem:[%s0 + $0x20] sm:$0xff]
    %v138 = vld [vmem:[%s0 + $0x28] sm:$0xff]
    %v139 = vld [vmem:[%s0 + $0x30] sm:$0xff]
    %v140 = vld [vmem:[%s0 + $0x38] sm:$0xff]
    %v141 = vld [vmem:[%s0 + $0x40] sm:$0xff]
    %v142 = vld [vmem:[%s0 + $0x48] sm:$0xff]
    %v143 = vld [vmem:[%s0 + $0x50] sm:$0xff]
    %v144 = vld [vmem:[%s0 + $0x58] sm:$0xff]
    %v145 = vld [vmem:[%s0 + $0x60] sm:$0xff]
    %v146 = vld [vmem:[%s0 + $0x68] sm:$0xff]
    %v147 = vld [vmem:[%s0 + $0x70] sm:$0xff]
    %v148 = vld [vmem:[%s0 + $0x78] sm:$0xff]
    %v149 = vld [vmem:[%s0 + $0x80] sm:$0xff]
    %v150 = vld [vmem:[%s0 + $0x88] sm:$0xff]
    %v151 = vld [vmem:[%s0 + $0x90] sm:$0xff]
    %v152 = vld [vmem:[%s0 + $0x98] sm:$0xff]
    %v153 = vld [vmem:[%s0 + $0xa0] sm:$0xff]
    %v154 = vld [vmem:[%s0 + $0xa8] sm:$0xff]
    %v155 = vld [vmem:[%s0 + $0xb0] sm:$0xff]
    %v156 = vld [vmem:[%s0 + $0xb8] sm:$0xff]
    %v157 = vld [vmem:[%s0 + $0xc0] sm:$0xff]
    %v158 = vld [vmem:[%s0 + $0xc8] sm:$0xff]
    %v159 = vld [vmem:[%s0 + $0xd0] sm:$0xff]
    %v160 = vld [vmem:[%s0 + $0xd8] sm:$0xff]
    %v161 = vld [vmem:[#allocation2] sm:$0xff]
    %v162 = vld [vmem:[#allocation2 + $0x8] sm:$0xff]
    %v163 = vld [vmem:[#allocation2 + $0x10] sm:$0xff]
    %v164 = vld [vmem:[#allocation2 + $0x18] sm:$0xff]
    %v165 = vld [vmem:[#allocation2 + $0x20] sm:$0xff]
    %v166 = vld [vmem:[#allocation2 + $0x28] sm:$0xff]
    %v167 = vld [vmem:[#allocation2 + $0x30] sm:$0xff]
    %v168 = vld [vmem:[#allocation2 + $0x38] sm:$0xff]
    %v169 = vld [vmem:[#allocation2 + $0x40] sm:$0xff]
    %v170 = vld [vmem:[#allocation2 + $0x48] sm:$0xff]
    %v171 = vld [vmem:[#allocation2 + $0x50] sm:$0xff]
    %v172 = vld [vmem:[#allocation2 + $0x58] sm:$0xff]
    %v173 = vld [vmem:[#allocation2 + $0x60] sm:$0xff]
    %v174 = vld [vmem:[#allocation2 + $0x68] sm:$0xff]
    %v175 = vld [vmem:[#allocation2 + $0x70] sm:$0xff]
    %v176 = vld [vmem:[#allocation2 + $0x78] sm:$0xff]
    %v177 = vld [vmem:[#allocation2 + $0x80] sm:$0xff]
    %v178 = vld [vmem:[#allocation2 + $0x88] sm:$0xff]
    %v179 = vld [vmem:[#allocation2 + $0x90] sm:$0xff]
    %v180 = vld [vmem:[#allocation2 + $0x98] sm:$0xff]
    %v181 = vld [vmem:[#allocation2 + $0xa0] sm:$0xff]
    %v182 = vld [vmem:[#allocation2 + $0xa8] sm:$0xff]
    %v183 = vld [vmem:[#allocation2 + $0xb0] sm:$0xff]
    %v184 = vld [vmem:[#allocation2 + $0xb8] sm:$0xff]
    %v185 = vld [vmem:[#allocation2 + $0xc0] sm:$0xff]
    %v186 = vld [vmem:[#allocation2 + $0xc8] sm:$0xff]
    %v187 = vld [vmem:[#allocation2 + $0xd0] sm:$0xff]
    %v188 = vld [vmem:[#allocation2 + $0xd8] sm:$0xff]
    %v189 = vld [vmem:[#allocation2 + $0xe0] sm:$0xff]
    %v190 = vld [vmem:[#allocation2 + $0xe8] sm:$0xff]
    %v191 = vld [vmem:[#allocation2 + $0xf0] sm:$0xff]
    %v192 = vld [vmem:[#allocation2 + $0xf8] sm:$0xff]
    %v193 = vld [vmem:[#allocation2 + $0x100] sm:$0xff]
    %v194 = vld [vmem:[#allocation2 + $0x108] sm:$0xff]
    %v195 = vld [vmem:[#allocation2 + $0x110] sm:$0xff]
    %v196 = vld [vmem:[#allocation2 + $0x118] sm:$0xff]
    %v197 = vld [vmem:[#allocation2 + $0x120] sm:$0xff]
    %v198 = vld [vmem:[#allocation2 + $0x128] sm:$0xff]
    %v199 = vld [vmem:[#allocation2 + $0x130] sm:$0xff]
    %v200 = vld [vmem:[#allocation2 + $0x138] sm:$0xff]
    %v201 = vld [vmem:[#allocation2 + $0x140] sm:$0xff]
    %v202 = vld [vmem:[#allocation2 + $0x148] sm:$0xff]
    %v203 = vld [vmem:[#allocation2 + $0x150] sm:$0xff]
    %v204 = vld [vmem:[#allocation2 + $0x158] sm:$0xff]
    %v205 = vld [vmem:[#allocation2 + $0x160] sm:$0xff]
    %v206 = vld [vmem:[#allocation2 + $0x168] sm:$0xff]
    %v207 = vld [vmem:[#allocation2 + $0x170] sm:$0xff]
    %v208 = vld [vmem:[#allocation2 + $0x178] sm:$0xff]
    %v209 = vld [vmem:[#allocation2 + $0x180] sm:$0xff]
    %v210 = vld [vmem:[#allocation2 + $0x188] sm:$0xff]
    %v211 = vld [vmem:[#allocation2 + $0x190] sm:$0xff]
    %v212 = vld [vmem:[#allocation2 + $0x198] sm:$0xff]
    %v213 = vld [vmem:[#allocation2 + $0x1a0] sm:$0xff]
    %v214 = vld [vmem:[#allocation2 + $0x1a8] sm:$0xff]
    %v215 = vld [vmem:[#allocation2 + $0x1b0] sm:$0xff]
    %v216 = vld [vmem:[#allocation2 + $0x1b8] sm:$0xff]
    %v217 = vld [vmem:[#allocation2 + $0x1c0] sm:$0xff]
    %v218 = vld [vmem:[#allocation2 + $0x1c8] sm:$0xff]
    %v219 = vld [vmem:[#allocation2 + $0x1d0] sm:$0xff]
    %v220 = vld [vmem:[#allocation2 + $0x1d8] sm:$0xff]
    %v221 = vld [vmem:[#allocation2 + $0x1e0] sm:$0xff]
    %v222 = vld [vmem:[#allocation2 + $0x1e8] sm:$0xff]
    %v223 = vld [vmem:[#allocation2 + $0x1f0] sm:$0xff]
    %v224 = vld [vmem:[#allocation2 + $0x1f8] sm:$0xff]
    %v225 = vld [vmem:[#allocation2 + $0x200] sm:$0xff]
    %v226 = vld [vmem:[#allocation2 + $0x208] sm:$0xff]
    %v227 = vld [vmem:[#allocation2 + $0x210] sm:$0xff]
    %v228 = vld [vmem:[#allocation2 + $0x218] sm:$0xff]
    %v229 = vld [vmem:[#allocation2 + $0x220] sm:$0xff]
    %v230 = vld [vmem:[#allocation2 + $0x228] sm:$0xff]
    %v231 = vld [vmem:[#allocation2 + $0x230] sm:$0xff]
    %v232 = vld [vmem:[#allocation2 + $0x238] sm:$0xff]
    %v233 = vld [vmem:[#allocation2 + $0x240] sm:$0xff]
    %v234 = vld [vmem:[#allocation2 + $0x248] sm:$0xff]
    %v235 = vld [vmem:[#allocation2 + $0x250] sm:$0xff]
    %v236 = vld [vmem:[#allocation2 + $0x258] sm:$0xff]
    %v237 = vld [vmem:[#allocation2 + $0x260] sm:$0xff]
    %v238 = vld [vmem:[#allocation2 + $0x268] sm:$0xff]
    %v239 = vld [vmem:[#allocation2 + $0x270] sm:$0xff]
    %v240 = vld [vmem:[#allocation2 + $0x278] sm:$0xff]
    %v241 = vld [vmem:[#allocation2 + $0x280] sm:$0xff]
    %v242 = vld [vmem:[#allocation2 + $0x288] sm:$0xff]
    %v243 = vld [vmem:[#allocation2 + $0x290] sm:$0xff]
    %v244 = vld [vmem:[#allocation2 + $0x298] sm:$0xff]
    %251 = vrot.lane.b32.xlu0 %v140, 28
    %v252 = vpop.permute.xlu0 %251
    %253 = vrot.lane.b32.xlu0 %v141, 28
    %v254 = vpop.permute.xlu0 %253
    %255 = vrot.lane.b32.xlu0 %v142, 28
    %v256 = vpop.permute.xlu0 %255
    %257 = vrot.lane.b32.xlu0 %v143, 28
    %v258 = vpop.permute.xlu0 %257
    %259 = vrot.lane.b32.xlu0 %v144, 28
    %v260 = vpop.permute.xlu0 %259
    %261 = vrot.lane.b32.xlu0 %v145, 28
    %v262 = vpop.permute.xlu0 %261
    %275 = vrot.lane.b32.xlu0 %v147, 56
    %v276 = vpop.permute.xlu0 %275
    %277 = vrot.lane.b32.xlu0 %v148, 56
    %v278 = vpop.permute.xlu0 %277
    %279 = vrot.lane.b32.xlu0 %v149, 56
    %v280 = vpop.permute.xlu0 %279
    %281 = vrot.lane.b32.xlu0 %v150, 56
    %v282 = vpop.permute.xlu0 %281
    %283 = vrot.lane.b32.xlu0 %v151, 56
    %v284 = vpop.permute.xlu0 %283
    %285 = vrot.lane.b32.xlu0 %v152, 56
    %v286 = vpop.permute.xlu0 %285
    %299 = vrot.lane.b32.xlu0 %v154, 84
    %v300 = vpop.permute.xlu0 %299
    %301 = vrot.lane.b32.xlu0 %v155, 84
    %v302 = vpop.permute.xlu0 %301
    %303 = vrot.lane.b32.xlu0 %v156, 84
    %v304 = vpop.permute.xlu0 %303
    %305 = vrot.lane.b32.xlu0 %v157, 84
    %v306 = vpop.permute.xlu0 %305
    %307 = vrot.lane.b32.xlu0 %v158, 84
    %v308 = vpop.permute.xlu0 %307
    %309 = vrot.lane.b32.xlu0 %v159, 84
    %v310 = vpop.permute.xlu0 %309
    %323 = vrot.lane.b32.xlu0 %v134, 112
    %v324 = vpop.permute.xlu0 %323
    %325 = vrot.lane.b32.xlu0 %v135, 112
    %v326 = vpop.permute.xlu0 %325
    %327 = vrot.lane.b32.xlu0 %v136, 112
    %v328 = vpop.permute.xlu0 %327
    %329 = vrot.lane.b32.xlu0 %v137, 112
    %v330 = vpop.permute.xlu0 %329
    %331 = vrot.lane.b32.xlu0 %v138, 112
    %v332 = vpop.permute.xlu0 %331
    %333 = vrot.lane.b32.xlu0 %v139, 112
    %v334 = vpop.permute.xlu0 %333
    %342 = vrot.lane.b32.xlu0 %v141, 12
    %v343 = vpop.permute.xlu0 %342
    %344 = vrot.lane.b32.xlu0 %v142, 12
    %v345 = vpop.permute.xlu0 %344
    %346 = vrot.lane.b32.xlu0 %v143, 12
    %v347 = vpop.permute.xlu0 %346
    %348 = vrot.lane.b32.xlu0 %v144, 12
    %v349 = vpop.permute.xlu0 %348
    %350 = vrot.lane.b32.xlu0 %v145, 12
    %v351 = vpop.permute.xlu0 %350
    %352 = vrot.lane.b32.xlu0 %v146, 12
    %v353 = vpop.permute.xlu0 %352
    %vm360 = vcmask 228352
    %v361 = vsel %vm360, %v133, %v252
    %v362 = vsel %vm360, %v134, %v254
    %v363 = vsel %vm360, %v135, %v256
    %v364 = vsel %vm360, %v136, %v258
    %v365 = vsel %vm360, %v137, %v260
    %v366 = vsel %vm360, %v138, %v262
    %vm367 = vcmask 457728
    %v368 = vsel %vm367, %v361, %v276
    %v369 = vsel %vm367, %v362, %v278
    %v370 = vsel %vm367, %v363, %v280
    %v371 = vsel %vm367, %v364, %v282
    %v372 = vsel %vm367, %v365, %v284
    %v373 = vsel %vm367, %v366, %v286
    %vm374 = vcmask 687104
    %v375 = vsel %vm374, %v368, %v300
    %v376 = vsel %vm374, %v369, %v302
    %v377 = vsel %vm374, %v370, %v304
    %v378 = vsel %vm374, %v371, %v306
    %v379 = vsel %vm374, %v372, %v308
    %v380 = vsel %vm374, %v373, %v310
    %vm381 = vcmask 916480
    %v382 = vsel %vm381, %v375, %v324
    %v383 = vsel %vm381, %v376, %v326
    %v384 = vsel %vm381, %v377, %v328
    %v385 = vsel %vm381, %v378, %v330
    %v386 = vsel %vm381, %v379, %v332
    %v387 = vsel %vm381, %v380, %v334
    %vm388 = vcmask 97280
    %v389 = vsel %vm388, %v324, %v343
    %v390 = vsel %vm388, %v326, %v345
    %v391 = vsel %vm388, %v328, %v347
    %v392 = vsel %vm388, %v330, %v349
    %v393 = vsel %vm388, %v332, %v351
    %v394 = vsel %vm388, %v334, %v353
    %vm395 = vcmask 326656
    %v397 = vsel %vm395, %v389, 0
    %v400 = vsel %vm395, %v390, 0
    %v403 = vsel %vm395, %v391, 0
    %v406 = vsel %vm395, %v392, 0
    %v409 = vsel %vm395, %v393, 0
    %v412 = vsel %vm395, %v394, 0
    %414 = vmatprep.subr.mxu0 %v162
    %415 = vmatpush1.msra.mxu0 %v161
    %416 = vmatprep.subr.mxu0 %v166
    %417 = vmatpush1.msra.mxu0 %v165
    %418 = vmatprep.subr.mxu0 %v170
    %419 = vmatpush1.msra.mxu0 %v169
    %420 = vmatprep.subr.mxu0 %v174
    %421 = vmatpush1.msra.mxu0 %v173
    %422 = vmatprep.subr.mxu0 %v178
    %423 = vmatpush1.msra.mxu0 %v177
    %424 = vmatprep.subr.mxu0 %v182
    %425 = vmatpush1.msra.mxu0 %v181
    %426 = vmatprep.subr.mxu0 %v186
    %427 = vmatpush1.msra.mxu0 %v185
    %428 = vmatprep.subr.mxu0 %v190
    %429 = vmatpush1.msra.mxu0 %v189
    %430 = vmatprep.subr.mxu0 %v194
    %431 = vmatpush1.msra.mxu0 %v193
    %432 = vmatprep.subr.mxu0 %v198
    %433 = vmatpush1.msra.mxu0 %v197
    %434 = vmatprep.subr.mxu0 %v202
    %435 = vmatpush1.msra.mxu0 %v201
    %436 = vmatprep.subr.mxu0 %v206
    %437 = vmatpush1.msra.mxu0 %v205
    %438 = vmatprep.subr.mxu0 %v210
    %439 = vmatpush1.msra.mxu0 %v209
    %440 = vmatprep.subr.mxu0 %v214
    %441 = vmatpush1.msra.mxu0 %v213
    %442 = vmatprep.subr.mxu0 %v218
    %443 = vmatpush1.msra.mxu0 %v217
    %444 = vmatprep.subr.mxu0 %v222
    %445 = vmatpush1.msra.mxu0 %v221
    %446 = vmatprep.subr.mxu0 %v226
    %447 = vmatpush1.msra.mxu0 %v225
    %448 = vmatprep.subr.mxu0 %v230
    %449 = vmatpush1.msra.mxu0 %v229
    %450 = vmatprep.subr.mxu0 %v234
    %451 = vmatpush1.msra.mxu0 %v233
    %452 = vmatprep.subr.mxu0 %v238
    %453 = vmatpush1.msra.mxu0 %v237
    %454 = vmatprep.subr.mxu0 %v242
    %455 = vmatpush1.msra.mxu0 %v241
    %456 = vmatprep.subr.mxu0 0.0
    %457 = vmatpush1.msra.mxu0 0.0
    %458 = vmatprep.subr.mxu0 0.0
    %459 = vmatpush1.msra.mxu0 0.0
    %460 = vmatprep.subr.mxu0 0.0
    %461 = vmatpush1.msra.mxu0 0.0
    %462 = vmatprep.subr.mxu0 0.0
    %463 = vmatpush1.msra.mxu0 0.0
    %464 = vmatprep.subr.mxu0 0.0
    %465 = vmatpush1.msra.mxu0 0.0
    %466 = vmatprep.subr.mxu0 0.0
    %467 = vmatpush1.msra.mxu0 0.0
    %468 = vmatprep.subr.mxu0 0.0
    %469 = vmatpush1.msra.mxu0 0.0
    %470 = vmatprep.subr.mxu0 0.0
    %471 = vmatpush1.msra.mxu0 0.0
    %472 = vmatprep.subr.mxu0 0.0
    %473 = vmatpush1.msra.mxu0 0.0
    %474 = vmatprep.subr.mxu0 0.0
    %475 = vmatpush1.msra.mxu0 0.0
    %476 = vmatprep.subr.mxu0 0.0
    %477 = vmatpush1.msra.mxu0 0.0
    %478 = vmatprep.mubr.f32.mxu0 %v397
    %479 = vmatmul.mubr.f32.gmra.mrb[0].mxu0 %v382
    %v480 = vpop.f32.mrb[0].mxu0
    %v481 = vadd.f32 0.0, %v480
    %v482 = vpop.f32.mrb[0].mxu0
    %v483 = vadd.f32 0.0, %v482
    %484 = vmatprep.mubr.f32.mxu0 %v400
    %485 = vmatmul.mubr.f32.gmra.mrb[0].mxu0 %v383
    %v486 = vpop.f32.mrb[0].mxu0
    %v487 = vadd.f32 0.0, %v486
    %v488 = vpop.f32.mrb[0].mxu0
    %v489 = vadd.f32 0.0, %v488
    %490 = vmatprep.mubr.f32.mxu0 %v403
    %491 = vmatmul.mubr.f32.gmra.mrb[0].mxu0 %v384
    %v492 = vpop.f32.mrb[0].mxu0
    %v493 = vadd.f32 0.0, %v492
    %v494 = vpop.f32.mrb[0].mxu0
    %v495 = vadd.f32 0.0, %v494
    %496 = vmatprep.mubr.f32.mxu0 %v406
    %497 = vmatmul.mubr.f32.gmra.mrb[0].mxu0 %v385
    %v498 = vpop.f32.mrb[0].mxu0
    %v499 = vadd.f32 0.0, %v498
    %v500 = vpop.f32.mrb[0].mxu0
    %v501 = vadd.f32 0.0, %v500
    %502 = vmatprep.mubr.f32.mxu0 %v409
    %503 = vmatmul.mubr.f32.gmra.mrb[0].mxu0 %v386
    %v504 = vpop.f32.mrb[0].mxu0
    %v505 = vadd.f32 0.0, %v504
    %v506 = vpop.f32.mrb[0].mxu0
    %v507 = vadd.f32 0.0, %v506
    %508 = vmatprep.mubr.f32.mxu0 %v412
    %509 = vmatmul.mubr.f32.gmra.mrb[0].mxu0 %v387
    %v510 = vpop.f32.mrb[0].mxu0
    %v511 = vadd.f32 0.0, %v510
    %v512 = vpop.f32.mrb[0].mxu0
    %v513 = vadd.f32 0.0, %v512
    %514 = vdwg.mxu0
    %515 = vmatprep.subr.mxu0 %v164
    %516 = vmatpush1.msra.mxu0 %v163
    %517 = vmatprep.subr.mxu0 %v168
    %518 = vmatpush1.msra.mxu0 %v167
    %519 = vmatprep.subr.mxu0 %v172
    %520 = vmatpush1.msra.mxu0 %v171
    %521 = vmatprep.subr.mxu0 %v176
    %522 = vmatpush1.msra.mxu0 %v175
    %523 = vmatprep.subr.mxu0 %v180
    %524 = vmatpush1.msra.mxu0 %v179
    %525 = vmatprep.subr.mxu0 %v184
    %526 = vmatpush1.msra.mxu0 %v183
    %527 = vmatprep.subr.mxu0 %v188
    %528 = vmatpush1.msra.mxu0 %v187
    %529 = vmatprep.subr.mxu0 %v192
    %530 = vmatpush1.msra.mxu0 %v191
    %531 = vmatprep.subr.mxu0 %v196
    %532 = vmatpush1.msra.mxu0 %v195
    %533 = vmatprep.subr.mxu0 %v200
    %534 = vmatpush1.msra.mxu0 %v199
    %535 = vmatprep.subr.mxu0 %v204
    %536 = vmatpush1.msra.mxu0 %v203
    %537 = vmatprep.subr.mxu0 %v208
    %538 = vmatpush1.msra.mxu0 %v207
    %539 = vmatprep.subr.mxu0 %v212
    %540 = vmatpush1.msra.mxu0 %v211
    %541 = vmatprep.subr.mxu0 %v216
    %542 = vmatpush1.msra.mxu0 %v215
    %543 = vmatprep.subr.mxu0 %v220
    %544 = vmatpush1.msra.mxu0 %v219
    %545 = vmatprep.subr.mxu0 %v224
    %546 = vmatpush1.msra.mxu0 %v223
    %547 = vmatprep.subr.mxu0 %v228
    %548 = vmatpush1.msra.mxu0 %v227
    %549 = vmatprep.subr.mxu0 %v232
    %550 = vmatpush1.msra.mxu0 %v231
    %551 = vmatprep.subr.mxu0 %v236
    %552 = vmatpush1.msra.mxu0 %v235
    %553 = vmatprep.subr.mxu0 %v240
    %554 = vmatpush1.msra.mxu0 %v239
    %555 = vmatprep.subr.mxu0 %v244
    %556 = vmatpush1.msra.mxu0 %v243
    %557 = vmatprep.subr.mxu0 0.0
    %558 = vmatpush1.msra.mxu0 0.0
    %559 = vmatprep.subr.mxu0 0.0
    %560 = vmatpush1.msra.mxu0 0.0
    %561 = vmatprep.subr.mxu0 0.0
    %562 = vmatpush1.msra.mxu0 0.0
    %563 = vmatprep.subr.mxu0 0.0
    %564 = vmatpush1.msra.mxu0 0.0
    %565 = vmatprep.subr.mxu0 0.0
    %566 = vmatpush1.msra.mxu0 0.0
    %567 = vmatprep.subr.mxu0 0.0
    %568 = vmatpush1.msra.mxu0 0.0
    %569 = vmatprep.subr.mxu0 0.0
    %570 = vmatpush1.msra.mxu0 0.0
    %571 = vmatprep.subr.mxu0 0.0
    %572 = vmatpush1.msra.mxu0 0.0
    %573 = vmatprep.subr.mxu0 0.0
    %574 = vmatpush1.msra.mxu0 0.0
    %575 = vmatprep.subr.mxu0 0.0
    %576 = vmatpush1.msra.mxu0 0.0
    %577 = vmatprep.subr.mxu0 0.0
    %578 = vmatpush1.msra.mxu0 0.0
    %579 = vmatprep.mubr.f32.mxu0 %v397
    %580 = vmatmul.mubr.f32.gmra.mrb[0].mxu0 %v382
    %v581 = vpop.f32.mrb[0].mxu0
    %v582 = vadd.f32 0.0, %v581
    %v583 = vpop.f32.mrb[0].mxu0
    %v584 = vadd.f32 0.0, %v583
    %585 = vmatprep.mubr.f32.mxu0 %v400
    %586 = vmatmul.mubr.f32.gmra.mrb[0].mxu0 %v383
    %v587 = vpop.f32.mrb[0].mxu0
    %v588 = vadd.f32 0.0, %v587
    %v589 = vpop.f32.mrb[0].mxu0
    %v590 = vadd.f32 0.0, %v589
    %591 = vmatprep.mubr.f32.mxu0 %v403
    %592 = vmatmul.mubr.f32.gmra.mrb[0].mxu0 %v384
    %v593 = vpop.f32.mrb[0].mxu0
    %v594 = vadd.f32 0.0, %v593
    %v595 = vpop.f32.mrb[0].mxu0
    %v596 = vadd.f32 0.0, %v595
    %597 = vmatprep.mubr.f32.mxu0 %v406
    %598 = vmatmul.mubr.f32.gmra.mrb[0].mxu0 %v385
    %v599 = vpop.f32.mrb[0].mxu0
    %v600 = vadd.f32 0.0, %v599
    %v601 = vpop.f32.mrb[0].mxu0
    %v602 = vadd.f32 0.0, %v601
    %603 = vmatprep.mubr.f32.mxu0 %v409
    %604 = vmatmul.mubr.f32.gmra.mrb[0].mxu0 %v386
    %v605 = vpop.f32.mrb[0].mxu0
    %v606 = vadd.f32 0.0, %v605
    %v607 = vpop.f32.mrb[0].mxu0
    %v608 = vadd.f32 0.0, %v607
    %609 = vmatprep.mubr.f32.mxu0 %v412
    %610 = vmatmul.mubr.f32.gmra.mrb[0].mxu0 %v387
    %v611 = vpop.f32.mrb[0].mxu0
    %v612 = vadd.f32 0.0, %v611
    %v613 = vpop.f32.mrb[0].mxu0
    %v614 = vadd.f32 0.0, %v613
    %615 = vdwg.mxu0
    %v616 = vmax.f32 %v481, %v483
    %v617 = vmax.f32 %v487, %v489
    %v618 = vmax.f32 %v493, %v495
    %v619 = vmax.f32 %v499, %v501
    %v620 = vmax.f32 %v505, %v507
    %v621 = vmax.f32 %v511, %v513
    %v622 = vmax.f32 %v582, %v584
    %v623 = vmax.f32 %v588, %v590
    %v624 = vmax.f32 %v594, %v596
    %v625 = vmax.f32 %v600, %v602
    %v626 = vmax.f32 %v606, %v608
    %v627 = vmax.f32 %v612, %v614
    %v628 = vmax.f32 %v616, %v622
    %v629 = vmax.f32 %v617, %v623
    %v630 = vmax.f32 %v618, %v624
    %v631 = vmax.f32 %v619, %v625
    %v632 = vmax.f32 %v620, %v626
    %v633 = vmax.f32 %v621, %v627
    %v634 = vld [vmem:[#allocation4] sm:$0x1]
    %v636 = vlaneseq
    %v637 = vshrl.u32 %v636, 7
    %v638 = vsub.s32 0, %v637
    %v639 = vrot.slane %v634, %v638
    %v641 = vadd.f32 %v628, %v639
    %v642 = vadd.f32 %v629, %v639
    %v643 = vadd.f32 %v630, %v639
    %v644 = vadd.f32 %v631, %v639
    %v645 = vadd.f32 %v632, %v639
    %v646 = vadd.f32 %v633, %v639
    %v647 = vmax.f32 %v641, 0.0
    %v648 = vmax.f32 %v642, 0.0
    %v649 = vmax.f32 %v643, 0.0
    %v650 = vmax.f32 %v644, 0.0
    %v651 = vmax.f32 %v645, 0.0
    %v652 = vmax.f32 %v646, 0.0
    %653 = vrot.lane.b32.xlu0 %v154, 28
    %v654 = vpop.permute.xlu0 %653
    %655 = vrot.lane.b32.xlu0 %v155, 28
    %v656 = vpop.permute.xlu0 %655
    %657 = vrot.lane.b32.xlu0 %v156, 28
    %v658 = vpop.permute.xlu0 %657
    %659 = vrot.lane.b32.xlu0 %v157, 28
    %v660 = vpop.permute.xlu0 %659
    %661 = vrot.lane.b32.xlu0 %v158, 28
    %v662 = vpop.permute.xlu0 %661
    %663 = vrot.lane.b32.xlu0 %v159, 28
    %v664 = vpop.permute.xlu0 %663
    %671 = vrot.lane.b32.xlu0 %v134, 56
    %v672 = vpop.permute.xlu0 %671
    %673 = vrot.lane.b32.xlu0 %v135, 56
    %v674 = vpop.permute.xlu0 %673
    %675 = vrot.lane.b32.xlu0 %v136, 56
    %v676 = vpop.permute.xlu0 %675
    %677 = vrot.lane.b32.xlu0 %v137, 56
    %v678 = vpop.permute.xlu0 %677
    %679 = vrot.lane.b32.xlu0 %v138, 56
    %v680 = vpop.permute.xlu0 %679
    %681 = vrot.lane.b32.xlu0 %v139, 56
    %v682 = vpop.permute.xlu0 %681
    %689 = vrot.lane.b32.xlu0 %v141, 84
    %v690 = vpop.permute.xlu0 %689
    %691 = vrot.lane.b32.xlu0 %v142, 84
    %v692 = vpop.permute.xlu0 %691
    %693 = vrot.lane.b32.xlu0 %v143, 84
    %v694 = vpop.permute.xlu0 %693
    %695 = vrot.lane.b32.xlu0 %v144, 84
    %v696 = vpop.permute.xlu0 %695
    %697 = vrot.lane.b32.xlu0 %v145, 84
    %v698 = vpop.permute.xlu0 %697
    %699 = vrot.lane.b32.xlu0 %v146, 84
    %v700 = vpop.permute.xlu0 %699
    %708 = vrot.lane.b32.xlu0 %v148, 112
    %v709 = vpop.permute.xlu0 %708
    %710 = vrot.lane.b32.xlu0 %v149, 112
    %v711 = vpop.permute.xlu0 %710
    %712 = vrot.lane.b32.xlu0 %v150, 112
    %v713 = vpop.permute.xlu0 %712
    %714 = vrot.lane.b32.xlu0 %v151, 112
    %v715 = vpop.permute.xlu0 %714
    %716 = vrot.lane.b32.xlu0 %v152, 112
    %v717 = vpop.permute.xlu0 %716
    %718 = vrot.lane.b32.xlu0 %v153, 112
    %v719 = vpop.permute.xlu0 %718
    %727 = vrot.lane.b32.xlu0 %v155, 12
    %v728 = vpop.permute.xlu0 %727
    %729 = vrot.lane.b32.xlu0 %v156, 12
    %v730 = vpop.permute.xlu0 %729
    %731 = vrot.lane.b32.xlu0 %v157, 12
    %v732 = vpop.permute.xlu0 %731
    %733 = vrot.lane.b32.xlu0 %v158, 12
    %v734 = vpop.permute.xlu0 %733
    %735 = vrot.lane.b32.xlu0 %v159, 12
    %v736 = vpop.permute.xlu0 %735
    %737 = vrot.lane.b32.xlu0 %v160, 12
    %v738 = vpop.permute.xlu0 %737
    %v745 = vsel %vm360, %v147, %v654
    %v746 = vsel %vm360, %v148, %v656
    %v747 = vsel %vm360, %v149, %v658
    %v748 = vsel %vm360, %v150, %v660
    %v749 = vsel %vm360, %v151, %v662
    %v750 = vsel %vm360, %v152, %v664
    %v751 = vsel %vm367, %v745, %v672
    %v752 = vsel %vm367, %v746, %v674
    %v753 = vsel %vm367, %v747, %v676
    %v754 = vsel %vm367, %v748, %v678
    %v755 = vsel %vm367, %v749, %v680
    %v756 = vsel %vm367, %v750, %v682
    %v757 = vsel %vm374, %v751, %v690
    %v758 = vsel %vm374, %v752, %v692
    %v759 = vsel %vm374, %v753, %v694
    %v760 = vsel %vm374, %v754, %v696
    %v761 = vsel %vm374, %v755, %v698
    %v762 = vsel %vm374, %v756, %v700
    %v763 = vsel %vm381, %v757, %v709
    %v764 = vsel %vm381, %v758, %v711
    %v765 = vsel %vm381, %v759, %v713
    %v766 = vsel %vm381, %v760, %v715
    %v767 = vsel %vm381, %v761, %v717
    %v768 = vsel %vm381, %v762, %v719
    %v769 = vsel %vm388, %v709, %v728
    %v770 = vsel %vm388, %v711, %v730
    %v771 = vsel %vm388, %v713, %v732
    %v772 = vsel %vm388, %v715, %v734
    %v773 = vsel %vm388, %v717, %v736
    %v774 = vsel %vm388, %v719, %v738
    %v776 = vsel %vm395, %v769, 0
    %v779 = vsel %vm395, %v770, 0
    %v782 = vsel %vm395, %v771, 0
    %v785 = vsel %vm395, %v772, 0
    %v788 = vsel %vm395, %v773, 0
    %v791 = vsel %vm395, %v774, 0
    %793 = vmatprep.subr.mxu0 %v162
    %794 = vmatpush1.msra.mxu0 %v161
    %795 = vmatprep.subr.mxu0 %v166
    %796 = vmatpush1.msra.mxu0 %v165
    %797 = vmatprep.subr.mxu0 %v170
    %798 = vmatpush1.msra.mxu0 %v169
    %799 = vmatprep.subr.mxu0 %v174
    %800 = vmatpush1.msra.mxu0 %v173
    %801 = vmatprep.subr.mxu0 %v178
    %802 = vmatpush1.msra.mxu0 %v177
    %803 = vmatprep.subr.mxu0 %v182
    %804 = vmatpush1.msra.mxu0 %v181
    %805 = vmatprep.subr.mxu0 %v186
    %806 = vmatpush1.msra.mxu0 %v185
    %807 = vmatprep.subr.mxu0 %v190
    %808 = vmatpush1.msra.mxu0 %v189
    %809 = vmatprep.subr.mxu0 %v194
    %810 = vmatpush1.msra.mxu0 %v193
    %811 = vmatprep.subr.mxu0 %v198
    %812 = vmatpush1.msra.mxu0 %v197
    %813 = vmatprep.subr.mxu0 %v202
    %814 = vmatpush1.msra.mxu0 %v201
    %815 = vmatprep.subr.mxu0 %v206
    %816 = vmatpush1.msra.mxu0 %v205
    %817 = vmatprep.subr.mxu0 %v210
    %818 = vmatpush1.msra.mxu0 %v209
    %819 = vmatprep.subr.mxu0 %v214
    %820 = vmatpush1.msra.mxu0 %v213
    %821 = vmatprep.subr.mxu0 %v218
    %822 = vmatpush1.msra.mxu0 %v217
    %823 = vmatprep.subr.mxu0 %v222
    %824 = vmatpush1.msra.mxu0 %v221
    %825 = vmatprep.subr.mxu0 %v226
    %826 = vmatpush1.msra.mxu0 %v225
    %827 = vmatprep.subr.mxu0 %v230
    %828 = vmatpush1.msra.mxu0 %v229
    %829 = vmatprep.subr.mxu0 %v234
    %830 = vmatpush1.msra.mxu0 %v233
    %831 = vmatprep.subr.mxu0 %v238
    %832 = vmatpush1.msra.mxu0 %v237
    %833 = vmatprep.subr.mxu0 %v242
    %834 = vmatpush1.msra.mxu0 %v241
    %835 = vmatprep.subr.mxu0 0.0
    %836 = vmatpush1.msra.mxu0 0.0
    %837 = vmatprep.subr.mxu0 0.0
    %838 = vmatpush1.msra.mxu0 0.0
    %839 = vmatprep.subr.mxu0 0.0
    %840 = vmatpush1.msra.mxu0 0.0
    %841 = vmatprep.subr.mxu0 0.0
    %842 = vmatpush1.msra.mxu0 0.0
    %843 = vmatprep.subr.mxu0 0.0
    %844 = vmatpush1.msra.mxu0 0.0
    %845 = vmatprep.subr.mxu0 0.0
    %846 = vmatpush1.msra.mxu0 0.0
    %847 = vmatprep.subr.mxu0 0.0
    %848 = vmatpush1.msra.mxu0 0.0
    %849 = vmatprep.subr.mxu0 0.0
    %850 = vmatpush1.msra.mxu0 0.0
    %851 = vmatprep.subr.mxu0 0.0
    %852 = vmatpush1.msra.mxu0 0.0
    %853 = vmatprep.subr.mxu0 0.0
    %854 = vmatpush1.msra.mxu0 0.0
    %855 = vmatprep.subr.mxu0 0.0
    %856 = vmatpush1.msra.mxu0 0.0
    %857 = vmatprep.mubr.f32.mxu0 %v776
    %858 = vmatmul.mubr.f32.gmra.mrb[0].mxu0 %v763
    %v859 = vpop.f32.mrb[0].mxu0
    %v860 = vadd.f32 0.0, %v859
    %v861 = vpop.f32.mrb[0].mxu0
    %v862 = vadd.f32 0.0, %v861
    %863 = vmatprep.mubr.f32.mxu0 %v779
    %864 = vmatmul.mubr.f32.gmra.mrb[0].mxu0 %v764
    %v865 = vpop.f32.mrb[0].mxu0
    %v866 = vadd.f32 0.0, %v865
    %v867 = vpop.f32.mrb[0].mxu0
    %v868 = vadd.f32 0.0, %v867
    %869 = vmatprep.mubr.f32.mxu0 %v782
    %870 = vmatmul.mubr.f32.gmra.mrb[0].mxu0 %v765
    %v871 = vpop.f32.mrb[0].mxu0
    %v872 = vadd.f32 0.0, %v871
    %v873 = vpop.f32.mrb[0].mxu0
    %v874 = vadd.f32 0.0, %v873
    %875 = vmatprep.mubr.f32.mxu0 %v785
    %876 = vmatmul.mubr.f32.gmra.mrb[0].mxu0 %v766
    %v877 = vpop.f32.mrb[0].mxu0
    %v878 = vadd.f32 0.0, %v877
    %v879 = vpop.f32.mrb[0].mxu0
    %v880 = vadd.f32 0.0, %v879
    %881 = vmatprep.mubr.f32.mxu0 %v788
    %882 = vmatmul.mubr.f32.gmra.mrb[0].mxu0 %v767
    %v883 = vpop.f32.mrb[0].mxu0
    %v884 = vadd.f32 0.0, %v883
    %v885 = vpop.f32.mrb[0].mxu0
    %v886 = vadd.f32 0.0, %v885
    %887 = vmatprep.mubr.f32.mxu0 %v791
    %888 = vmatmul.mubr.f32.gmra.mrb[0].mxu0 %v768
    %v889 = vpop.f32.mrb[0].mxu0
    %v890 = vadd.f32 0.0, %v889
    %v891 = vpop.f32.mrb[0].mxu0
    %v892 = vadd.f32 0.0, %v891
    %893 = vdwg.mxu0
    %894 = vmatprep.subr.mxu0 %v164
    %895 = vmatpush1.msra.mxu0 %v163
    %896 = vmatprep.subr.mxu0 %v168
    %897 = vmatpush1.msra.mxu0 %v167
    %898 = vmatprep.subr.mxu0 %v172
    %899 = vmatpush1.msra.mxu0 %v171
    %900 = vmatprep.subr.mxu0 %v176
    %901 = vmatpush1.msra.mxu0 %v175
    %902 = vmatprep.subr.mxu0 %v180
    %903 = vmatpush1.msra.mxu0 %v179
    %904 = vmatprep.subr.mxu0 %v184
    %905 = vmatpush1.msra.mxu0 %v183
    %906 = vmatprep.subr.mxu0 %v188
    %907 = vmatpush1.msra.mxu0 %v187
    %908 = vmatprep.subr.mxu0 %v192
    %909 = vmatpush1.msra.mxu0 %v191
    %910 = vmatprep.subr.mxu0 %v196
    %911 = vmatpush1.msra.mxu0 %v195
    %912 = vmatprep.subr.mxu0 %v200
    %913 = vmatpush1.msra.mxu0 %v199
    %914 = vmatprep.subr.mxu0 %v204
    %915 = vmatpush1.msra.mxu0 %v203
    %916 = vmatprep.subr.mxu0 %v208
    %917 = vmatpush1.msra.mxu0 %v207
    %918 = vmatprep.subr.mxu0 %v212
    %919 = vmatpush1.msra.mxu0 %v211
    %920 = vmatprep.subr.mxu0 %v216
    %921 = vmatpush1.msra.mxu0 %v215
    %922 = vmatprep.subr.mxu0 %v220
    %923 = vmatpush1.msra.mxu0 %v219
    %924 = vmatprep.subr.mxu0 %v224
    %925 = vmatpush1.msra.mxu0 %v223
    %926 = vmatprep.subr.mxu0 %v228
    %927 = vmatpush1.msra.mxu0 %v227
    %928 = vmatprep.subr.mxu0 %v232
    %929 = vmatpush1.msra.mxu0 %v231
    %930 = vmatprep.subr.mxu0 %v236
    %931 = vmatpush1.msra.mxu0 %v235
    %932 = vmatprep.subr.mxu0 %v240
    %933 = vmatpush1.msra.mxu0 %v239
    %934 = vmatprep.subr.mxu0 %v244
    %935 = vmatpush1.msra.mxu0 %v243
    %936 = vmatprep.subr.mxu0 0.0
    %937 = vmatpush1.msra.mxu0 0.0
    %938 = vmatprep.subr.mxu0 0.0
    %939 = vmatpush1.msra.mxu0 0.0
    %940 = vmatprep.subr.mxu0 0.0
    %941 = vmatpush1.msra.mxu0 0.0
    %942 = vmatprep.subr.mxu0 0.0
    %943 = vmatpush1.msra.mxu0 0.0
    %944 = vmatprep.subr.mxu0 0.0
    %945 = vmatpush1.msra.mxu0 0.0
    %946 = vmatprep.subr.mxu0 0.0
    %947 = vmatpush1.msra.mxu0 0.0
    %948 = vmatprep.subr.mxu0 0.0
    %949 = vmatpush1.msra.mxu0 0.0
    %950 = vmatprep.subr.mxu0 0.0
    %951 = vmatpush1.msra.mxu0 0.0
    %952 = vmatprep.subr.mxu0 0.0
    %953 = vmatpush1.msra.mxu0 0.0
    %954 = vmatprep.subr.mxu0 0.0
    %955 = vmatpush1.msra.mxu0 0.0
    %956 = vmatprep.subr.mxu0 0.0
    %957 = vmatpush1.msra.mxu0 0.0
    %958 = vmatprep.mubr.f32.mxu0 %v776
    %959 = vmatmul.mubr.f32.gmra.mrb[0].mxu0 %v763
    %v960 = vpop.f32.mrb[0].mxu0
    %v961 = vadd.f32 0.0, %v960
    %v962 = vpop.f32.mrb[0].mxu0
    %v963 = vadd.f32 0.0, %v962
    %964 = vmatprep.mubr.f32.mxu0 %v779
    %965 = vmatmul.mubr.f32.gmra.mrb[0].mxu0 %v764
    %v966 = vpop.f32.mrb[0].mxu0
    %v967 = vadd.f32 0.0, %v966
    %v968 = vpop.f32.mrb[0].mxu0
    %v969 = vadd.f32 0.0, %v968
    %970 = vmatprep.mubr.f32.mxu0 %v782
    %971 = vmatmul.mubr.f32.gmra.mrb[0].mxu0 %v765
    %v972 = vpop.f32.mrb[0].mxu0
    %v973 = vadd.f32 0.0, %v972
    %v974 = vpop.f32.mrb[0].mxu0
    %v975 = vadd.f32 0.0, %v974
    %976 = vmatprep.mubr.f32.mxu0 %v785
    %977 = vmatmul.mubr.f32.gmra.mrb[0].mxu0 %v766
    %v978 = vpop.f32.mrb[0].mxu0
    %v979 = vadd.f32 0.0, %v978
    %v980 = vpop.f32.mrb[0].mxu0
    %v981 = vadd.f32 0.0, %v980
    %982 = vmatprep.mubr.f32.mxu0 %v788
    %983 = vmatmul.mubr.f32.gmra.mrb[0].mxu0 %v767
    %v984 = vpop.f32.mrb[0].mxu0
    %v985 = vadd.f32 0.0, %v984
    %v986 = vpop.f32.mrb[0].mxu0
    %v987 = vadd.f32 0.0, %v986
    %988 = vmatprep.mubr.f32.mxu0 %v791
    %989 = vmatmul.mubr.f32.gmra.mrb[0].mxu0 %v768
    %v990 = vpop.f32.mrb[0].mxu0
    %v991 = vadd.f32 0.0, %v990
    %v992 = vpop.f32.mrb[0].mxu0
    %v993 = vadd.f32 0.0, %v992
    %994 = vdwg.mxu0
    %v995 = vmax.f32 %v860, %v862
    %v996 = vmax.f32 %v866, %v868
    %v997 = vmax.f32 %v872, %v874
    %v998 = vmax.f32 %v878, %v880
    %v999 = vmax.f32 %v884, %v886
    %v1000 = vmax.f32 %v890, %v892
    %v1001 = vmax.f32 %v961, %v963
    %v1002 = vmax.f32 %v967, %v969
    %v1003 = vmax.f32 %v973, %v975
    %v1004 = vmax.f32 %v979, %v981
    %v1005 = vmax.f32 %v985, %v987
    %v1006 = vmax.f32 %v991, %v993
    %v1007 = vmax.f32 %v995, %v1001
    %v1008 = vmax.f32 %v996, %v1002
    %v1009 = vmax.f32 %v997, %v1003
    %v1010 = vmax.f32 %v998, %v1004
    %v1011 = vmax.f32 %v999, %v1005
    %v1012 = vmax.f32 %v1000, %v1006
    %v1013 = vadd.f32 %v1007, %v639
    %v1014 = vadd.f32 %v1008, %v639
    %v1015 = vadd.f32 %v1009, %v639
    %v1016 = vadd.f32 %v1010, %v639
    %v1017 = vadd.f32 %v1011, %v639
    %v1018 = vadd.f32 %v1012, %v639
    %v1019 = vmax.f32 %v1013, 0.0
    %v1020 = vmax.f32 %v1014, 0.0
    %v1021 = vmax.f32 %v1015, 0.0
    %v1022 = vmax.f32 %v1016, 0.0
    %v1023 = vmax.f32 %v1017, 0.0
    %v1024 = vmax.f32 %v1018, 0.0
    %v1025 = vld [vmem:[#allocation6] sm:$0xff]
    %v1026 = vld [vmem:[#allocation6 + $0x8] sm:$0xff]
    %v1027 = vld [vmem:[#allocation6 + $0x10] sm:$0xff]
    %v1028 = vld [vmem:[#allocation6 + $0x18] sm:$0xff]
    %v1029 = vld [vmem:[#allocation6 + $0x20] sm:$0xff]
    %v1030 = vld [vmem:[#allocation6 + $0x28] sm:$0xff]
    %v1031 = vld [vmem:[#allocation6 + $0x30] sm:$0xff]
    %v1032 = vld [vmem:[#allocation6 + $0x38] sm:$0xff]
    %v1033 = vld [vmem:[#allocation6 + $0x40] sm:$0xff]
    %v1034 = vld [vmem:[#allocation6 + $0x48] sm:$0xff]
    %v1035 = vld [vmem:[#allocation6 + $0x50] sm:$0xff]
    %v1036 = vld [vmem:[#allocation6 + $0x58] sm:$0xff]
    %v1037 = vld [vmem:[#allocation6 + $0x60] sm:$0xff]
    %v1038 = vld [vmem:[#allocation6 + $0x68] sm:$0xff]
    %v1039 = vld [vmem:[#allocation6 + $0x70] sm:$0xff]
    %v1040 = vld [vmem:[#allocation6 + $0x78] sm:$0xff]
    %v1041 = vld [vmem:[#allocation6 + $0x80] sm:$0xff]
    %v1042 = vld [vmem:[#allocation6 + $0x88] sm:$0xff]
    %v1043 = vld [vmem:[#allocation6 + $0x90] sm:$0xff]
    %v1044 = vld [vmem:[#allocation6 + $0x98] sm:$0xff]
    %v1045 = vld [vmem:[#allocation6 + $0xa0] sm:$0xff]
    %v1046 = vld [vmem:[#allocation6 + $0xa8] sm:$0xff]
    %v1047 = vld [vmem:[#allocation6 + $0xb0] sm:$0xff]
    %v1048 = vld [vmem:[#allocation6 + $0xb8] sm:$0xff]
    %v1049 = vld [vmem:[#allocation6 + $0xc0] sm:$0xff]
    %v1050 = vld [vmem:[#allocation6 + $0xc8] sm:$0xff]
    %v1051 = vld [vmem:[#allocation6 + $0xd0] sm:$0xff]
    %v1052 = vld [vmem:[#allocation6 + $0xd8] sm:$0xff]
    %v1053 = vld [vmem:[#allocation6 + $0xe0] sm:$0xff]
    %v1054 = vld [vmem:[#allocation6 + $0xe8] sm:$0xff]
    %v1055 = vld [vmem:[#allocation6 + $0xf0] sm:$0xff]
    %v1056 = vld [vmem:[#allocation6 + $0xf8] sm:$0xff]
    %v1057 = vld [vmem:[#allocation6 + $0x100] sm:$0xff]
    %v1058 = vld [vmem:[#allocation6 + $0x108] sm:$0xff]
    %v1059 = vld [vmem:[#allocation6 + $0x110] sm:$0xff]
    %v1060 = vld [vmem:[#allocation6 + $0x118] sm:$0xff]
    %v1061 = vld [vmem:[#allocation6 + $0x120] sm:$0xff]
    %v1062 = vld [vmem:[#allocation6 + $0x128] sm:$0xff]
    %v1063 = vld [vmem:[#allocation6 + $0x130] sm:$0xff]
    %v1064 = vld [vmem:[#allocation6 + $0x138] sm:$0xff]
    %v1065 = vld [vmem:[#allocation6 + $0x140] sm:$0xff]
    %v1066 = vld [vmem:[#allocation6 + $0x148] sm:$0xff]
    %v1067 = vld [vmem:[#allocation6 + $0x150] sm:$0xff]
    %v1068 = vld [vmem:[#allocation6 + $0x158] sm:$0xff]
    %v1069 = vld [vmem:[#allocation6 + $0x160] sm:$0xff]
    %v1070 = vld [vmem:[#allocation6 + $0x168] sm:$0xff]
    %v1071 = vld [vmem:[#allocation6 + $0x170] sm:$0xff]
    %v1072 = vld [vmem:[#allocation6 + $0x178] sm:$0xff]
    %v1073 = vld [vmem:[#allocation6 + $0x180] sm:$0xff]
    %v1074 = vld [vmem:[#allocation6 + $0x188] sm:$0xff]
    %v1075 = vld [vmem:[#allocation6 + $0x190] sm:$0xff]
    %v1076 = vld [vmem:[#allocation6 + $0x198] sm:$0xff]
    %v1077 = vld [vmem:[#allocation6 + $0x1a0] sm:$0xff]
    %v1078 = vld [vmem:[#allocation6 + $0x1a8] sm:$0xff]
    %v1079 = vld [vmem:[#allocation6 + $0x1b0] sm:$0xff]
    %v1080 = vld [vmem:[#allocation6 + $0x1b8] sm:$0xff]
    %v1081 = vld [vmem:[#allocation6 + $0x1c0] sm:$0xff]
    %v1082 = vld [vmem:[#allocation6 + $0x1c8] sm:$0xff]
    %v1083 = vld [vmem:[#allocation6 + $0x1d0] sm:$0xff]
    %v1084 = vld [vmem:[#allocation6 + $0x1d8] sm:$0xff]
    %v1085 = vld [vmem:[#allocation6 + $0x1e0] sm:$0xff]
    %v1086 = vld [vmem:[#allocation6 + $0x1e8] sm:$0xff]
    %v1087 = vld [vmem:[#allocation6 + $0x1f0] sm:$0xff]
    %v1088 = vld [vmem:[#allocation6 + $0x1f8] sm:$0xff]
    %v1089 = vld [vmem:[#allocation6 + $0x200] sm:$0xff]
    %v1090 = vld [vmem:[#allocation6 + $0x208] sm:$0xff]
    %v1091 = vld [vmem:[#allocation6 + $0x210] sm:$0xff]
    %v1092 = vld [vmem:[#allocation6 + $0x218] sm:$0xff]
    %v1093 = vld [vmem:[#allocation6 + $0x220] sm:$0xff]
    %v1094 = vld [vmem:[#allocation6 + $0x228] sm:$0xff]
    %v1095 = vld [vmem:[#allocation6 + $0x230] sm:$0xff]
    %v1096 = vld [vmem:[#allocation6 + $0x238] sm:$0xff]
    %v1097 = vld [vmem:[#allocation6 + $0x240] sm:$0xff]
    %v1098 = vld [vmem:[#allocation6 + $0x248] sm:$0xff]
    %v1099 = vld [vmem:[#allocation6 + $0x250] sm:$0xff]
    %v1100 = vld [vmem:[#allocation6 + $0x258] sm:$0xff]
    %v1101 = vld [vmem:[#allocation6 + $0x260] sm:$0xff]
    %v1102 = vld [vmem:[#allocation6 + $0x268] sm:$0xff]
    %v1103 = vld [vmem:[#allocation6 + $0x270] sm:$0xff]
    %v1104 = vld [vmem:[#allocation6 + $0x278] sm:$0xff]
    %v1105 = vld [vmem:[#allocation6 + $0x280] sm:$0xff]
    %v1106 = vld [vmem:[#allocation6 + $0x288] sm:$0xff]
    %v1107 = vld [vmem:[#allocation6 + $0x290] sm:$0xff]
    %v1108 = vld [vmem:[#allocation6 + $0x298] sm:$0xff]
    %v1109 = vld [vmem:[#allocation6 + $0x2a0] sm:$0xff]
    %v1110 = vld [vmem:[#allocation6 + $0x2a8] sm:$0xff]
    %v1111 = vld [vmem:[#allocation6 + $0x2b0] sm:$0xff]
    %v1112 = vld [vmem:[#allocation6 + $0x2b8] sm:$0xff]
    %v1113 = vld [vmem:[#allocation6 + $0x2c0] sm:$0xff]
    %v1114 = vld [vmem:[#allocation6 + $0x2c8] sm:$0xff]
    %v1115 = vld [vmem:[#allocation6 + $0x2d0] sm:$0xff]
    %v1116 = vld [vmem:[#allocation6 + $0x2d8] sm:$0xff]
    %v1117 = vld [vmem:[#allocation6 + $0x2e0] sm:$0xff]
    %v1118 = vld [vmem:[#allocation6 + $0x2e8] sm:$0xff]
    %v1119 = vld [vmem:[#allocation6 + $0x2f0] sm:$0xff]
    %v1120 = vld [vmem:[#allocation6 + $0x2f8] sm:$0xff]
    %v1121 = vld [vmem:[#allocation6 + $0x300] sm:$0xff]
    %v1122 = vld [vmem:[#allocation6 + $0x308] sm:$0xff]
    %v1123 = vld [vmem:[#allocation6 + $0x310] sm:$0xff]
    %v1124 = vld [vmem:[#allocation6 + $0x318] sm:$0xff]
    %v1125 = vld [vmem:[#allocation6 + $0x320] sm:$0xff]
    %v1126 = vld [vmem:[#allocation6 + $0x328] sm:$0xff]
    %v1127 = vld [vmem:[#allocation6 + $0x330] sm:$0xff]
    %v1128 = vld [vmem:[#allocation6 + $0x338] sm:$0xff]
    %v1129 = vld [vmem:[#allocation6 + $0x340] sm:$0xff]
    %v1130 = vld [vmem:[#allocation6 + $0x348] sm:$0xff]
    %v1131 = vld [vmem:[#allocation6 + $0x350] sm:$0xff]
    %v1132 = vld [vmem:[#allocation6 + $0x358] sm:$0xff]
    %v1133 = vld [vmem:[#allocation6 + $0x360] sm:$0xff]
    %v1134 = vld [vmem:[#allocation6 + $0x368] sm:$0xff]
    %v1135 = vld [vmem:[#allocation6 + $0x370] sm:$0xff]
    %v1136 = vld [vmem:[#allocation6 + $0x378] sm:$0xff]
    %v1137 = vld [vmem:[#allocation6 + $0x380] sm:$0xff]
    %v1138 = vld [vmem:[#allocation6 + $0x388] sm:$0xff]
    %v1139 = vld [vmem:[#allocation6 + $0x390] sm:$0xff]
    %v1140 = vld [vmem:[#allocation6 + $0x398] sm:$0xff]
    %v1141 = vld [vmem:[#allocation6 + $0x3a0] sm:$0xff]
    %v1142 = vld [vmem:[#allocation6 + $0x3a8] sm:$0xff]
    %v1143 = vld [vmem:[#allocation6 + $0x3b0] sm:$0xff]
    %v1144 = vld [vmem:[#allocation6 + $0x3b8] sm:$0xff]
    %v1145 = vld [vmem:[#allocation6 + $0x3c0] sm:$0xff]
    %v1146 = vld [vmem:[#allocation6 + $0x3c8] sm:$0xff]
    %v1147 = vld [vmem:[#allocation6 + $0x3d0] sm:$0xff]
    %v1148 = vld [vmem:[#allocation6 + $0x3d8] sm:$0xff]
    %v1149 = vld [vmem:[#allocation6 + $0x3e0] sm:$0xff]
    %v1150 = vld [vmem:[#allocation6 + $0x3e8] sm:$0xff]
    %v1151 = vld [vmem:[#allocation6 + $0x3f0] sm:$0xff]
    %v1152 = vld [vmem:[#allocation6 + $0x3f8] sm:$0xff]
    %v1153 = vld [vmem:[#allocation6 + $0x400] sm:$0xff]
    %v1154 = vld [vmem:[#allocation6 + $0x408] sm:$0xff]
    %v1155 = vld [vmem:[#allocation6 + $0x410] sm:$0xff]
    %v1156 = vld [vmem:[#allocation6 + $0x418] sm:$0xff]
    %v1157 = vld [vmem:[#allocation6 + $0x420] sm:$0xff]
    %v1158 = vld [vmem:[#allocation6 + $0x428] sm:$0xff]
    %v1159 = vld [vmem:[#allocation6 + $0x430] sm:$0xff]
    %v1160 = vld [vmem:[#allocation6 + $0x438] sm:$0xff]
    %v1161 = vld [vmem:[#allocation6 + $0x440] sm:$0xff]
    %v1162 = vld [vmem:[#allocation6 + $0x448] sm:$0xff]
    %v1163 = vld [vmem:[#allocation6 + $0x450] sm:$0xff]
    %v1164 = vld [vmem:[#allocation6 + $0x458] sm:$0xff]
    %v1165 = vld [vmem:[#allocation6 + $0x460] sm:$0xff]
    %v1166 = vld [vmem:[#allocation6 + $0x468] sm:$0xff]
    %v1167 = vld [vmem:[#allocation6 + $0x470] sm:$0xff]
    %v1168 = vld [vmem:[#allocation6 + $0x478] sm:$0xff]
    %v1169 = vld [vmem:[#allocation6 + $0x480] sm:$0xff]
    %v1170 = vld [vmem:[#allocation6 + $0x488] sm:$0xff]
    %v1171 = vld [vmem:[#allocation6 + $0x490] sm:$0xff]
    %v1172 = vld [vmem:[#allocation6 + $0x498] sm:$0xff]
    %v1173 = vld [vmem:[#allocation6 + $0x4a0] sm:$0xff]
    %v1174 = vld [vmem:[#allocation6 + $0x4a8] sm:$0xff]
    %v1175 = vld [vmem:[#allocation6 + $0x4b0] sm:$0xff]
    %v1176 = vld [vmem:[#allocation6 + $0x4b8] sm:$0xff]
    %v1177 = vld [vmem:[#allocation6 + $0x4c0] sm:$0xff]
    %v1178 = vld [vmem:[#allocation6 + $0x4c8] sm:$0xff]
    %v1179 = vld [vmem:[#allocation6 + $0x4d0] sm:$0xff]
    %v1180 = vld [vmem:[#allocation6 + $0x4d8] sm:$0xff]
    %v1181 = vld [vmem:[#allocation6 + $0x4e0] sm:$0xff]
    %v1182 = vld [vmem:[#allocation6 + $0x4e8] sm:$0xff]
    %v1183 = vld [vmem:[#allocation6 + $0x4f0] sm:$0xff]
    %v1184 = vld [vmem:[#allocation6 + $0x4f8] sm:$0xff]
    %v1185 = vld [vmem:[#allocation6 + $0x500] sm:$0xff]
    %v1186 = vld [vmem:[#allocation6 + $0x508] sm:$0xff]
    %v1187 = vld [vmem:[#allocation6 + $0x510] sm:$0xff]
    %v1188 = vld [vmem:[#allocation6 + $0x518] sm:$0xff]
    %v1189 = vld [vmem:[#allocation6 + $0x520] sm:$0xff]
    %v1190 = vld [vmem:[#allocation6 + $0x528] sm:$0xff]
    %v1191 = vld [vmem:[#allocation6 + $0x530] sm:$0xff]
    %v1192 = vld [vmem:[#allocation6 + $0x538] sm:$0xff]
    %v1193 = vld [vmem:[#allocation6 + $0x540] sm:$0xff]
    %v1194 = vld [vmem:[#allocation6 + $0x548] sm:$0xff]
    %v1195 = vld [vmem:[#allocation6 + $0x550] sm:$0xff]
    %v1196 = vld [vmem:[#allocation6 + $0x558] sm:$0xff]
    %v1197 = vld [vmem:[#allocation6 + $0x560] sm:$0xff]
    %v1198 = vld [vmem:[#allocation6 + $0x568] sm:$0xff]
    %v1199 = vld [vmem:[#allocation6 + $0x570] sm:$0xff]
    %v1200 = vld [vmem:[#allocation6 + $0x578] sm:$0xff]
    %v1201 = vld [vmem:[#allocation6 + $0x580] sm:$0xff]
    %v1202 = vld [vmem:[#allocation6 + $0x588] sm:$0xff]
    %v1203 = vld [vmem:[#allocation6 + $0x590] sm:$0xff]
    %v1204 = vld [vmem:[#allocation6 + $0x598] sm:$0xff]
    %v1205 = vld [vmem:[#allocation6 + $0x5a0] sm:$0xff]
    %v1206 = vld [vmem:[#allocation6 + $0x5a8] sm:$0xff]
    %v1207 = vld [vmem:[#allocation6 + $0x5b0] sm:$0xff]
    %v1208 = vld [vmem:[#allocation6 + $0x5b8] sm:$0xff]
    %v1209 = vld [vmem:[#allocation6 + $0x5c0] sm:$0xff]
    %v1210 = vld [vmem:[#allocation6 + $0x5c8] sm:$0xff]
    %v1211 = vld [vmem:[#allocation6 + $0x5d0] sm:$0xff]
    %v1212 = vld [vmem:[#allocation6 + $0x5d8] sm:$0xff]
    %v1213 = vld [vmem:[#allocation6 + $0x5e0] sm:$0xff]
    %v1214 = vld [vmem:[#allocation6 + $0x5e8] sm:$0xff]
    %v1215 = vld [vmem:[#allocation6 + $0x5f0] sm:$0xff]
    %v1216 = vld [vmem:[#allocation6 + $0x5f8] sm:$0xff]
    %v1217 = vld [vmem:[#allocation6 + $0x600] sm:$0xff]
    %v1218 = vld [vmem:[#allocation6 + $0x608] sm:$0xff]
    %v1219 = vld [vmem:[#allocation6 + $0x610] sm:$0xff]
    %v1220 = vld [vmem:[#allocation6 + $0x618] sm:$0xff]
    %v1221 = vld [vmem:[#allocation6 + $0x620] sm:$0xff]
    %v1222 = vld [vmem:[#allocation6 + $0x628] sm:$0xff]
    %v1223 = vld [vmem:[#allocation6 + $0x630] sm:$0xff]
    %v1224 = vld [vmem:[#allocation6 + $0x638] sm:$0xff]
    %v1225 = vld [vmem:[#allocation6 + $0x640] sm:$0xff]
    %v1226 = vld [vmem:[#allocation6 + $0x648] sm:$0xff]
    %v1227 = vld [vmem:[#allocation6 + $0x650] sm:$0xff]
    %v1228 = vld [vmem:[#allocation6 + $0x658] sm:$0xff]
    %v1229 = vld [vmem:[#allocation6 + $0x660] sm:$0xff]
    %v1230 = vld [vmem:[#allocation6 + $0x668] sm:$0xff]
    %v1231 = vld [vmem:[#allocation6 + $0x670] sm:$0xff]
    %v1232 = vld [vmem:[#allocation6 + $0x678] sm:$0xff]
    %v1233 = vld [vmem:[#allocation6 + $0x680] sm:$0xff]
    %v1234 = vld [vmem:[#allocation6 + $0x688] sm:$0xff]
    %v1235 = vld [vmem:[#allocation6 + $0x690] sm:$0xff]
    %v1236 = vld [vmem:[#allocation6 + $0x698] sm:$0xff]
    %v1237 = vld [vmem:[#allocation6 + $0x6a0] sm:$0xff]
    %v1238 = vld [vmem:[#allocation6 + $0x6a8] sm:$0xff]
    %v1239 = vld [vmem:[#allocation6 + $0x6b0] sm:$0xff]
    %v1240 = vld [vmem:[#allocation6 + $0x6b8] sm:$0xff]
    %v1241 = vld [vmem:[#allocation6 + $0x6c0] sm:$0xff]
    %v1242 = vld [vmem:[#allocation6 + $0x6c8] sm:$0xff]
    %v1243 = vld [vmem:[#allocation6 + $0x6d0] sm:$0xff]
    %v1244 = vld [vmem:[#allocation6 + $0x6d8] sm:$0xff]
    %v1245 = vld [vmem:[#allocation6 + $0x6e0] sm:$0xff]
    %v1246 = vld [vmem:[#allocation6 + $0x6e8] sm:$0xff]
    %v1247 = vld [vmem:[#allocation6 + $0x6f0] sm:$0xff]
    %v1248 = vld [vmem:[#allocation6 + $0x6f8] sm:$0xff]
    %v1249 = vld [vmem:[#allocation6 + $0x700] sm:$0xff]
    %v1250 = vld [vmem:[#allocation6 + $0x708] sm:$0xff]
    %v1251 = vld [vmem:[#allocation6 + $0x710] sm:$0xff]
    %v1252 = vld [vmem:[#allocation6 + $0x718] sm:$0xff]
    %v1253 = vld [vmem:[#allocation6 + $0x720] sm:$0xff]
    %v1254 = vld [vmem:[#allocation6 + $0x728] sm:$0xff]
    %v1255 = vld [vmem:[#allocation6 + $0x730] sm:$0xff]
    %v1256 = vld [vmem:[#allocation6 + $0x738] sm:$0xff]
    %v1257 = vld [vmem:[#allocation6 + $0x740] sm:$0xff]
    %v1258 = vld [vmem:[#allocation6 + $0x748] sm:$0xff]
    %v1259 = vld [vmem:[#allocation6 + $0x750] sm:$0xff]
    %v1260 = vld [vmem:[#allocation6 + $0x758] sm:$0xff]
    %v1261 = vld [vmem:[#allocation6 + $0x760] sm:$0xff]
    %v1262 = vld [vmem:[#allocation6 + $0x768] sm:$0xff]
    %v1263 = vld [vmem:[#allocation6 + $0x770] sm:$0xff]
    %v1264 = vld [vmem:[#allocation6 + $0x778] sm:$0xff]
    %v1265 = vld [vmem:[#allocation6 + $0x780] sm:$0xff]
    %v1266 = vld [vmem:[#allocation6 + $0x788] sm:$0xff]
    %v1267 = vld [vmem:[#allocation6 + $0x790] sm:$0xff]
    %v1268 = vld [vmem:[#allocation6 + $0x798] sm:$0xff]
    %v1269 = vld [vmem:[#allocation6 + $0x7a0] sm:$0xff]
    %v1270 = vld [vmem:[#allocation6 + $0x7a8] sm:$0xff]
    %v1271 = vld [vmem:[#allocation6 + $0x7b0] sm:$0xff]
    %v1272 = vld [vmem:[#allocation6 + $0x7b8] sm:$0xff]
    %v1273 = vld [vmem:[#allocation6 + $0x7c0] sm:$0xff]
    %v1274 = vld [vmem:[#allocation6 + $0x7c8] sm:$0xff]
    %v1275 = vld [vmem:[#allocation6 + $0x7d0] sm:$0xff]
    %v1276 = vld [vmem:[#allocation6 + $0x7d8] sm:$0xff]
    %v1277 = vld [vmem:[#allocation6 + $0x7e0] sm:$0xff]
    %v1278 = vld [vmem:[#allocation6 + $0x7e8] sm:$0xff]
    %v1279 = vld [vmem:[#allocation6 + $0x7f0] sm:$0xff]
    %v1280 = vld [vmem:[#allocation6 + $0x7f8] sm:$0xff]
    %v1281 = vld [vmem:[#allocation6 + $0x800] sm:$0xff]
    %v1282 = vld [vmem:[#allocation6 + $0x808] sm:$0xff]
    %v1283 = vld [vmem:[#allocation6 + $0x810] sm:$0xff]
    %v1284 = vld [vmem:[#allocation6 + $0x818] sm:$0xff]
    %v1285 = vld [vmem:[#allocation6 + $0x820] sm:$0xff]
    %v1286 = vld [vmem:[#allocation6 + $0x828] sm:$0xff]
    %v1287 = vld [vmem:[#allocation6 + $0x830] sm:$0xff]
    %v1288 = vld [vmem:[#allocation6 + $0x838] sm:$0xff]
    %v1289 = vld [vmem:[#allocation6 + $0x840] sm:$0xff]
    %v1290 = vld [vmem:[#allocation6 + $0x848] sm:$0xff]
    %v1291 = vld [vmem:[#allocation6 + $0x850] sm:$0xff]
    %v1292 = vld [vmem:[#allocation6 + $0x858] sm:$0xff]
    %v1293 = vld [vmem:[#allocation6 + $0x860] sm:$0xff]
    %v1294 = vld [vmem:[#allocation6 + $0x868] sm:$0xff]
    %v1295 = vld [vmem:[#allocation6 + $0x870] sm:$0xff]
    %v1296 = vld [vmem:[#allocation6 + $0x878] sm:$0xff]
    %v1297 = vld [vmem:[#allocation6 + $0x880] sm:$0xff]
    %v1298 = vld [vmem:[#allocation6 + $0x888] sm:$0xff]
    %v1299 = vld [vmem:[#allocation6 + $0x890] sm:$0xff]
    %v1300 = vld [vmem:[#allocation6 + $0x898] sm:$0xff]
    %v1301 = vld [vmem:[#allocation6 + $0x8a0] sm:$0xff]
    %v1302 = vld [vmem:[#allocation6 + $0x8a8] sm:$0xff]
    %v1303 = vld [vmem:[#allocation6 + $0x8b0] sm:$0xff]
    %v1304 = vld [vmem:[#allocation6 + $0x8b8] sm:$0xff]
    %v1305 = vld [vmem:[#allocation6 + $0x8c0] sm:$0xff]
    %v1306 = vld [vmem:[#allocation6 + $0x8c8] sm:$0xff]
    %v1307 = vld [vmem:[#allocation6 + $0x8d0] sm:$0xff]
    %v1308 = vld [vmem:[#allocation6 + $0x8d8] sm:$0xff]
    %v1309 = vld [vmem:[#allocation6 + $0x8e0] sm:$0xff]
    %v1310 = vld [vmem:[#allocation6 + $0x8e8] sm:$0xff]
    %v1311 = vld [vmem:[#allocation6 + $0x8f0] sm:$0xff]
    %v1312 = vld [vmem:[#allocation6 + $0x8f8] sm:$0xff]
    %v1313 = vld [vmem:[#allocation6 + $0x900] sm:$0xff]
    %v1314 = vld [vmem:[#allocation6 + $0x908] sm:$0xff]
    %v1315 = vld [vmem:[#allocation6 + $0x910] sm:$0xff]
    %v1316 = vld [vmem:[#allocation6 + $0x918] sm:$0xff]
    %v1317 = vld [vmem:[#allocation6 + $0x920] sm:$0xff]
    %v1318 = vld [vmem:[#allocation6 + $0x928] sm:$0xff]
    %v1319 = vld [vmem:[#allocation6 + $0x930] sm:$0xff]
    %v1320 = vld [vmem:[#allocation6 + $0x938] sm:$0xff]
    %v1321 = vld [vmem:[#allocation6 + $0x940] sm:$0xff]
    %v1322 = vld [vmem:[#allocation6 + $0x948] sm:$0xff]
    %v1323 = vld [vmem:[#allocation6 + $0x950] sm:$0xff]
    %v1324 = vld [vmem:[#allocation6 + $0x958] sm:$0xff]
    %v1325 = vld [vmem:[#allocation6 + $0x960] sm:$0xff]
    %v1326 = vld [vmem:[#allocation6 + $0x968] sm:$0xff]
    %v1327 = vld [vmem:[#allocation6 + $0x970] sm:$0xff]
    %v1328 = vld [vmem:[#allocation6 + $0x978] sm:$0xff]
    %v1329 = vld [vmem:[#allocation6 + $0x980] sm:$0xff]
    %v1330 = vld [vmem:[#allocation6 + $0x988] sm:$0xff]
    %v1331 = vld [vmem:[#allocation6 + $0x990] sm:$0xff]
    %v1332 = vld [vmem:[#allocation6 + $0x998] sm:$0xff]
    %v1333 = vld [vmem:[#allocation6 + $0x9a0] sm:$0xff]
    %v1334 = vld [vmem:[#allocation6 + $0x9a8] sm:$0xff]
    %v1335 = vld [vmem:[#allocation6 + $0x9b0] sm:$0xff]
    %v1336 = vld [vmem:[#allocation6 + $0x9b8] sm:$0xff]
    %v1337 = vld [vmem:[#allocation6 + $0x9c0] sm:$0xff]
    %v1338 = vld [vmem:[#allocation6 + $0x9c8] sm:$0xff]
    %v1339 = vld [vmem:[#allocation6 + $0x9d0] sm:$0xff]
    %v1340 = vld [vmem:[#allocation6 + $0x9d8] sm:$0xff]
    %v1341 = vld [vmem:[#allocation6 + $0x9e0] sm:$0xff]
    %v1342 = vld [vmem:[#allocation6 + $0x9e8] sm:$0xff]
    %v1343 = vld [vmem:[#allocation6 + $0x9f0] sm:$0xff]
    %v1344 = vld [vmem:[#allocation6 + $0x9f8] sm:$0xff]
    %v1345 = vld [vmem:[#allocation6 + $0xa00] sm:$0xff]
    %v1346 = vld [vmem:[#allocation6 + $0xa08] sm:$0xff]
    %v1347 = vld [vmem:[#allocation6 + $0xa10] sm:$0xff]
    %v1348 = vld [vmem:[#allocation6 + $0xa18] sm:$0xff]
    %v1349 = vld [vmem:[#allocation6 + $0xa20] sm:$0xff]
    %v1350 = vld [vmem:[#allocation6 + $0xa28] sm:$0xff]
    %v1351 = vld [vmem:[#allocation6 + $0xa30] sm:$0xff]
    %v1352 = vld [vmem:[#allocation6 + $0xa38] sm:$0xff]
    %v1353 = vld [vmem:[#allocation6 + $0xa40] sm:$0xff]
    %v1354 = vld [vmem:[#allocation6 + $0xa48] sm:$0xff]
    %v1355 = vld [vmem:[#allocation6 + $0xa50] sm:$0xff]
    %v1356 = vld [vmem:[#allocation6 + $0xa58] sm:$0xff]
    %v1357 = vld [vmem:[#allocation6 + $0xa60] sm:$0xff]
    %v1358 = vld [vmem:[#allocation6 + $0xa68] sm:$0xff]
    %v1359 = vld [vmem:[#allocation6 + $0xa70] sm:$0xff]
    %v1360 = vld [vmem:[#allocation6 + $0xa78] sm:$0xff]
    %v1361 = vld [vmem:[#allocation6 + $0xa80] sm:$0xff]
    %v1362 = vld [vmem:[#allocation6 + $0xa88] sm:$0xff]
    %v1363 = vld [vmem:[#allocation6 + $0xa90] sm:$0xff]
    %v1364 = vld [vmem:[#allocation6 + $0xa98] sm:$0xff]
    %v1365 = vld [vmem:[#allocation6 + $0xaa0] sm:$0xff]
    %v1366 = vld [vmem:[#allocation6 + $0xaa8] sm:$0xff]
    %v1367 = vld [vmem:[#allocation6 + $0xab0] sm:$0xff]
    %v1368 = vld [vmem:[#allocation6 + $0xab8] sm:$0xff]
    %v1369 = vld [vmem:[#allocation6 + $0xac0] sm:$0xff]
    %v1370 = vld [vmem:[#allocation6 + $0xac8] sm:$0xff]
    %v1371 = vld [vmem:[#allocation6 + $0xad0] sm:$0xff]
    %v1372 = vld [vmem:[#allocation6 + $0xad8] sm:$0xff]
    %v1373 = vld [vmem:[#allocation6 + $0xae0] sm:$0xff]
    %v1374 = vld [vmem:[#allocation6 + $0xae8] sm:$0xff]
    %v1375 = vld [vmem:[#allocation6 + $0xaf0] sm:$0xff]
    %v1376 = vld [vmem:[#allocation6 + $0xaf8] sm:$0xff]
    %v1377 = vld [vmem:[#allocation6 + $0xb00] sm:$0xff]
    %v1378 = vld [vmem:[#allocation6 + $0xb08] sm:$0xff]
    %v1379 = vld [vmem:[#allocation6 + $0xb10] sm:$0xff]
    %v1380 = vld [vmem:[#allocation6 + $0xb18] sm:$0xff]
    %v1381 = vld [vmem:[#allocation6 + $0xb20] sm:$0xff]
    %v1382 = vld [vmem:[#allocation6 + $0xb28] sm:$0xff]
    %v1383 = vld [vmem:[#allocation6 + $0xb30] sm:$0xff]
    %v1384 = vld [vmem:[#allocation6 + $0xb38] sm:$0xff]
    %v1385 = vld [vmem:[#allocation6 + $0xb40] sm:$0xff]
    %v1386 = vld [vmem:[#allocation6 + $0xb48] sm:$0xff]
    %v1387 = vld [vmem:[#allocation6 + $0xb50] sm:$0xff]
    %v1388 = vld [vmem:[#allocation6 + $0xb58] sm:$0xff]
    %v1389 = vld [vmem:[#allocation6 + $0xb60] sm:$0xff]
    %v1390 = vld [vmem:[#allocation6 + $0xb68] sm:$0xff]
    %v1391 = vld [vmem:[#allocation6 + $0xb70] sm:$0xff]
    %v1392 = vld [vmem:[#allocation6 + $0xb78] sm:$0xff]
    %v1393 = vld [vmem:[#allocation6 + $0xb80] sm:$0xff]
    %v1394 = vld [vmem:[#allocation6 + $0xb88] sm:$0xff]
    %v1395 = vld [vmem:[#allocation6 + $0xb90] sm:$0xff]
    %v1396 = vld [vmem:[#allocation6 + $0xb98] sm:$0xff]
    %v1397 = vld [vmem:[#allocation6 + $0xba0] sm:$0xff]
    %v1398 = vld [vmem:[#allocation6 + $0xba8] sm:$0xff]
    %v1399 = vld [vmem:[#allocation6 + $0xbb0] sm:$0xff]
    %v1400 = vld [vmem:[#allocation6 + $0xbb8] sm:$0xff]
    %v1401 = vld [vmem:[#allocation6 + $0xbc0] sm:$0xff]
    %v1402 = vld [vmem:[#allocation6 + $0xbc8] sm:$0xff]
    %v1403 = vld [vmem:[#allocation6 + $0xbd0] sm:$0xff]
    %v1404 = vld [vmem:[#allocation6 + $0xbd8] sm:$0xff]
    %v1405 = vld [vmem:[#allocation6 + $0xbe0] sm:$0xff]
    %v1406 = vld [vmem:[#allocation6 + $0xbe8] sm:$0xff]
    %v1407 = vld [vmem:[#allocation6 + $0xbf0] sm:$0xff]
    %v1408 = vld [vmem:[#allocation6 + $0xbf8] sm:$0xff]
    %1409 = vmatprep.subr.mxu0 %v1026
    %1410 = vmatpush1.msra.mxu0 %v1025
    %1411 = vmatprep.subr.mxu0 %v1030
    %1412 = vmatpush1.msra.mxu0 %v1029
    %1413 = vmatprep.subr.mxu0 %v1034
    %1414 = vmatpush1.msra.mxu0 %v1033
    %1415 = vmatprep.subr.mxu0 %v1038
    %1416 = vmatpush1.msra.mxu0 %v1037
    %1417 = vmatprep.subr.mxu0 %v1042
    %1418 = vmatpush1.msra.mxu0 %v1041
    %1419 = vmatprep.subr.mxu0 %v1046
    %1420 = vmatpush1.msra.mxu0 %v1045
    %1421 = vmatprep.subr.mxu0 %v1050
    %1422 = vmatpush1.msra.mxu0 %v1049
    %1423 = vmatprep.subr.mxu0 %v1054
    %1424 = vmatpush1.msra.mxu0 %v1053
    %1425 = vmatprep.subr.mxu0 %v1058
    %1426 = vmatpush1.msra.mxu0 %v1057
    %1427 = vmatprep.subr.mxu0 %v1062
    %1428 = vmatpush1.msra.mxu0 %v1061
    %1429 = vmatprep.subr.mxu0 %v1066
    %1430 = vmatpush1.msra.mxu0 %v1065
    %1431 = vmatprep.subr.mxu0 %v1070
    %1432 = vmatpush1.msra.mxu0 %v1069
    %1433 = vmatprep.subr.mxu0 %v1074
    %1434 = vmatpush1.msra.mxu0 %v1073
    %1435 = vmatprep.subr.mxu0 %v1078
    %1436 = vmatpush1.msra.mxu0 %v1077
    %1437 = vmatprep.subr.mxu0 %v1082
    %1438 = vmatpush1.msra.mxu0 %v1081
    %1439 = vmatprep.subr.mxu0 %v1086
    %1440 = vmatpush1.msra.mxu0 %v1085
    %1441 = vmatprep.subr.mxu0 %v1090
    %1442 = vmatpush1.msra.mxu0 %v1089
    %1443 = vmatprep.subr.mxu0 %v1094
    %1444 = vmatpush1.msra.mxu0 %v1093
    %1445 = vmatprep.subr.mxu0 %v1098
    %1446 = vmatpush1.msra.mxu0 %v1097
    %1447 = vmatprep.subr.mxu0 %v1102
    %1448 = vmatpush1.msra.mxu0 %v1101
    %1449 = vmatprep.subr.mxu0 %v1106
    %1450 = vmatpush1.msra.mxu0 %v1105
    %1451 = vmatprep.subr.mxu0 %v1110
    %1452 = vmatpush1.msra.mxu0 %v1109
    %1453 = vmatprep.subr.mxu0 %v1114
    %1454 = vmatpush1.msra.mxu0 %v1113
    %1455 = vmatprep.subr.mxu0 %v1118
    %1456 = vmatpush1.msra.mxu0 %v1117
    %1457 = vmatprep.subr.mxu0 %v1122
    %1458 = vmatpush1.msra.mxu0 %v1121
    %1459 = vmatprep.subr.mxu0 %v1126
    %1460 = vmatpush1.msra.mxu0 %v1125
    %1461 = vmatprep.subr.mxu0 %v1130
    %1462 = vmatpush1.msra.mxu0 %v1129
    %1463 = vmatprep.subr.mxu0 %v1134
    %1464 = vmatpush1.msra.mxu0 %v1133
    %1465 = vmatprep.subr.mxu0 %v1138
    %1466 = vmatpush1.msra.mxu0 %v1137
    %1467 = vmatprep.subr.mxu0 %v1142
    %1468 = vmatpush1.msra.mxu0 %v1141
    %1469 = vmatprep.subr.mxu0 %v1146
    %1470 = vmatpush1.msra.mxu0 %v1145
    %1471 = vmatprep.subr.mxu0 %v1150
    %1472 = vmatpush1.msra.mxu0 %v1149
    %1473 = vmatprep.mubr.f32.mxu0 %v1019
    %1474 = vmatmul.mubr.f32.gmra.mrb[0].mxu0 %v647
    %v1475 = vpop.f32.mrb[0].mxu0
    %v1476 = vadd.f32 0.0, %v1475
    %v1477 = vpop.f32.mrb[0].mxu0
    %v1478 = vadd.f32 0.0, %v1477
    %1479 = vmatprep.mubr.f32.mxu0 %v1020
    %1480 = vmatmul.mubr.f32.gmra.mrb[0].mxu0 %v648
    %v1481 = vpop.f32.mrb[0].mxu0
    %v1482 = vadd.f32 0.0, %v1481
    %v1483 = vpop.f32.mrb[0].mxu0
    %v1484 = vadd.f32 0.0, %v1483
    %1485 = vmatprep.mubr.f32.mxu0 %v1021
    %1486 = vmatmul.mubr.f32.gmra.mrb[0].mxu0 %v649
    %v1487 = vpop.f32.mrb[0].mxu0
    %v1488 = vadd.f32 0.0, %v1487
    %v1489 = vpop.f32.mrb[0].mxu0
    %v1490 = vadd.f32 0.0, %v1489
    %1491 = vmatprep.mubr.f32.mxu0 %v1022
    %1492 = vmatmul.mubr.f32.gmra.mrb[0].mxu0 %v650
    %v1493 = vpop.f32.mrb[0].mxu0
    %v1494 = vadd.f32 0.0, %v1493
    %v1495 = vpop.f32.mrb[0].mxu0
    %v1496 = vadd.f32 0.0, %v1495
    %1497 = vdwg.mxu0
    %1498 = vmatprep.subr.mxu0 %v1154
    %1499 = vmatpush1.msra.mxu0 %v1153
    %1500 = vmatprep.subr.mxu0 %v1158
    %1501 = vmatpush1.msra.mxu0 %v1157
    %1502 = vmatprep.subr.mxu0 %v1162
    %1503 = vmatpush1.msra.mxu0 %v1161
    %1504 = vmatprep.subr.mxu0 %v1166
    %1505 = vmatpush1.msra.mxu0 %v1165
    %1506 = vmatprep.subr.mxu0 %v1170
    %1507 = vmatpush1.msra.mxu0 %v1169
    %1508 = vmatprep.subr.mxu0 %v1174
    %1509 = vmatpush1.msra.mxu0 %v1173
    %1510 = vmatprep.subr.mxu0 %v1178
    %1511 = vmatpush1.msra.mxu0 %v1177
    %1512 = vmatprep.subr.mxu0 %v1182
    %1513 = vmatpush1.msra.mxu0 %v1181
    %1514 = vmatprep.subr.mxu0 %v1186
    %1515 = vmatpush1.msra.mxu0 %v1185
    %1516 = vmatprep.subr.mxu0 %v1190
    %1517 = vmatpush1.msra.mxu0 %v1189
    %1518 = vmatprep.subr.mxu0 %v1194
    %1519 = vmatpush1.msra.mxu0 %v1193
    %1520 = vmatprep.subr.mxu0 %v1198
    %1521 = vmatpush1.msra.mxu0 %v1197
    %1522 = vmatprep.subr.mxu0 %v1202
    %1523 = vmatpush1.msra.mxu0 %v1201
    %1524 = vmatprep.subr.mxu0 %v1206
    %1525 = vmatpush1.msra.mxu0 %v1205
    %1526 = vmatprep.subr.mxu0 %v1210
    %1527 = vmatpush1.msra.mxu0 %v1209
    %1528 = vmatprep.subr.mxu0 %v1214
    %1529 = vmatpush1.msra.mxu0 %v1213
    %1530 = vmatprep.subr.mxu0 %v1218
    %1531 = vmatpush1.msra.mxu0 %v1217
    %1532 = vmatprep.subr.mxu0 %v1222
    %1533 = vmatpush1.msra.mxu0 %v1221
    %1534 = vmatprep.subr.mxu0 %v1226
    %1535 = vmatpush1.msra.mxu0 %v1225
    %1536 = vmatprep.subr.mxu0 %v1230
    %1537 = vmatpush1.msra.mxu0 %v1229
    %1538 = vmatprep.subr.mxu0 %v1234
    %1539 = vmatpush1.msra.mxu0 %v1233
    %1540 = vmatprep.subr.mxu0 %v1238
    %1541 = vmatpush1.msra.mxu0 %v1237
    %1542 = vmatprep.subr.mxu0 %v1242
    %1543 = vmatpush1.msra.mxu0 %v1241
    %1544 = vmatprep.subr.mxu0 %v1246
    %1545 = vmatpush1.msra.mxu0 %v1245
    %1546 = vmatprep.subr.mxu0 %v1250
    %1547 = vmatpush1.msra.mxu0 %v1249
    %1548 = vmatprep.subr.mxu0 %v1254
    %1549 = vmatpush1.msra.mxu0 %v1253
    %1550 = vmatprep.subr.mxu0 %v1258
    %1551 = vmatpush1.msra.mxu0 %v1257
    %1552 = vmatprep.subr.mxu0 %v1262
    %1553 = vmatpush1.msra.mxu0 %v1261
    %1554 = vmatprep.subr.mxu0 %v1266
    %1555 = vmatpush1.msra.mxu0 %v1265
    %1556 = vmatprep.subr.mxu0 %v1270
    %1557 = vmatpush1.msra.mxu0 %v1269
    %1558 = vmatprep.subr.mxu0 %v1274
    %1559 = vmatpush1.msra.mxu0 %v1273
    %1560 = vmatprep.subr.mxu0 %v1278
    %1561 = vmatpush1.msra.mxu0 %v1277
    %1562 = vmatprep.mubr.f32.mxu0 %v1020
    %1563 = vmatmul.mubr.f32.gmra.mrb[0].mxu0 %v648
    %v1564 = vpop.f32.mrb[0].mxu0
    %v1565 = vadd.f32 %v1476, %v1564
    %v1566 = vpop.f32.mrb[0].mxu0
    %v1567 = vadd.f32 %v1478, %v1566
    %1568 = vmatprep.mubr.f32.mxu0 %v1021
    %1569 = vmatmul.mubr.f32.gmra.mrb[0].mxu0 %v649
    %v1570 = vpop.f32.mrb[0].mxu0
    %v1571 = vadd.f32 %v1482, %v1570
    %v1572 = vpop.f32.mrb[0].mxu0
    %v1573 = vadd.f32 %v1484, %v1572
    %1574 = vmatprep.mubr.f32.mxu0 %v1022
    %1575 = vmatmul.mubr.f32.gmra.mrb[0].mxu0 %v650
    %v1576 = vpop.f32.mrb[0].mxu0
    %v1577 = vadd.f32 %v1488, %v1576
    %v1578 = vpop.f32.mrb[0].mxu0
    %v1579 = vadd.f32 %v1490, %v1578
    %1580 = vmatprep.mubr.f32.mxu0 %v1023
    %1581 = vmatmul.mubr.f32.gmra.mrb[0].mxu0 %v651
    %v1582 = vpop.f32.mrb[0].mxu0
    %v1583 = vadd.f32 %v1494, %v1582
    %v1584 = vpop.f32.mrb[0].mxu0
    %v1585 = vadd.f32 %v1496, %v1584
    %1586 = vdwg.mxu0
    %1587 = vmatprep.subr.mxu0 %v1282
    %1588 = vmatpush1.msra.mxu0 %v1281
    %1589 = vmatprep.subr.mxu0 %v1286
    %1590 = vmatpush1.msra.mxu0 %v1285
    %1591 = vmatprep.subr.mxu0 %v1290
    %1592 = vmatpush1.msra.mxu0 %v1289
    %1593 = vmatprep.subr.mxu0 %v1294
    %1594 = vmatpush1.msra.mxu0 %v1293
    %1595 = vmatprep.subr.mxu0 %v1298
    %1596 = vmatpush1.msra.mxu0 %v1297
    %1597 = vmatprep.subr.mxu0 %v1302
    %1598 = vmatpush1.msra.mxu0 %v1301
    %1599 = vmatprep.subr.mxu0 %v1306
    %1600 = vmatpush1.msra.mxu0 %v1305
    %1601 = vmatprep.subr.mxu0 %v1310
    %1602 = vmatpush1.msra.mxu0 %v1309
    %1603 = vmatprep.subr.mxu0 %v1314
    %1604 = vmatpush1.msra.mxu0 %v1313
    %1605 = vmatprep.subr.mxu0 %v1318
    %1606 = vmatpush1.msra.mxu0 %v1317
    %1607 = vmatprep.subr.mxu0 %v1322
    %1608 = vmatpush1.msra.mxu0 %v1321
    %1609 = vmatprep.subr.mxu0 %v1326
    %1610 = vmatpush1.msra.mxu0 %v1325
    %1611 = vmatprep.subr.mxu0 %v1330
    %1612 = vmatpush1.msra.mxu0 %v1329
    %1613 = vmatprep.subr.mxu0 %v1334
    %1614 = vmatpush1.msra.mxu0 %v1333
    %1615 = vmatprep.subr.mxu0 %v1338
    %1616 = vmatpush1.msra.mxu0 %v1337
    %1617 = vmatprep.subr.mxu0 %v1342
    %1618 = vmatpush1.msra.mxu0 %v1341
    %1619 = vmatprep.subr.mxu0 %v1346
    %1620 = vmatpush1.msra.mxu0 %v1345
    %1621 = vmatprep.subr.mxu0 %v1350
    %1622 = vmatpush1.msra.mxu0 %v1349
    %1623 = vmatprep.subr.mxu0 %v1354
    %1624 = vmatpush1.msra.mxu0 %v1353
    %1625 = vmatprep.subr.mxu0 %v1358
    %1626 = vmatpush1.msra.mxu0 %v1357
    %1627 = vmatprep.subr.mxu0 %v1362
    %1628 = vmatpush1.msra.mxu0 %v1361
    %1629 = vmatprep.subr.mxu0 %v1366
    %1630 = vmatpush1.msra.mxu0 %v1365
    %1631 = vmatprep.subr.mxu0 %v1370
    %1632 = vmatpush1.msra.mxu0 %v1369
    %1633 = vmatprep.subr.mxu0 %v1374
    %1634 = vmatpush1.msra.mxu0 %v1373
    %1635 = vmatprep.subr.mxu0 %v1378
    %1636 = vmatpush1.msra.mxu0 %v1377
    %1637 = vmatprep.subr.mxu0 %v1382
    %1638 = vmatpush1.msra.mxu0 %v1381
    %1639 = vmatprep.subr.mxu0 %v1386
    %1640 = vmatpush1.msra.mxu0 %v1385
    %1641 = vmatprep.subr.mxu0 %v1390
    %1642 = vmatpush1.msra.mxu0 %v1389
    %1643 = vmatprep.subr.mxu0 %v1394
    %1644 = vmatpush1.msra.mxu0 %v1393
    %1645 = vmatprep.subr.mxu0 %v1398
    %1646 = vmatpush1.msra.mxu0 %v1397
    %1647 = vmatprep.subr.mxu0 %v1402
    %1648 = vmatpush1.msra.mxu0 %v1401
    %1649 = vmatprep.subr.mxu0 %v1406
    %1650 = vmatpush1.msra.mxu0 %v1405
    %1651 = vmatprep.mubr.f32.mxu0 %v1021
    %1652 = vmatmul.mubr.f32.gmra.mrb[0].mxu0 %v649
    %v1653 = vpop.f32.mrb[0].mxu0
    %v1654 = vadd.f32 %v1565, %v1653
    %v1655 = vpop.f32.mrb[0].mxu0
    %v1656 = vadd.f32 %v1567, %v1655
    %1657 = vmatprep.mubr.f32.mxu0 %v1022
    %1658 = vmatmul.mubr.f32.gmra.mrb[0].mxu0 %v650
    %v1659 = vpop.f32.mrb[0].mxu0
    %v1660 = vadd.f32 %v1571, %v1659
    %v1661 = vpop.f32.mrb[0].mxu0
    %v1662 = vadd.f32 %v1573, %v1661
    %1663 = vmatprep.mubr.f32.mxu0 %v1023
    %1664 = vmatmul.mubr.f32.gmra.mrb[0].mxu0 %v651
    %v1665 = vpop.f32.mrb[0].mxu0
    %v1666 = vadd.f32 %v1577, %v1665
    %v1667 = vpop.f32.mrb[0].mxu0
    %v1668 = vadd.f32 %v1579, %v1667
    %1669 = vmatprep.mubr.f32.mxu0 %v1024
    %1670 = vmatmul.mubr.f32.gmra.mrb[0].mxu0 %v652
    %v1671 = vpop.f32.mrb[0].mxu0
    %v1672 = vadd.f32 %v1583, %v1671
    %v1673 = vpop.f32.mrb[0].mxu0
    %v1674 = vadd.f32 %v1585, %v1673
    %1675 = vdwg.mxu0
    %1676 = vmatprep.subr.mxu0 %v1028
    %1677 = vmatpush1.msra.mxu0 %v1027
    %1678 = vmatprep.subr.mxu0 %v1032
    %1679 = vmatpush1.msra.mxu0 %v1031
    %1680 = vmatprep.subr.mxu0 %v1036
    %1681 = vmatpush1.msra.mxu0 %v1035
    %1682 = vmatprep.subr.mxu0 %v1040
    %1683 = vmatpush1.msra.mxu0 %v1039
    %1684 = vmatprep.subr.mxu0 %v1044
    %1685 = vmatpush1.msra.mxu0 %v1043
    %1686 = vmatprep.subr.mxu0 %v1048
    %1687 = vmatpush1.msra.mxu0 %v1047
    %1688 = vmatprep.subr.mxu0 %v1052
    %1689 = vmatpush1.msra.mxu0 %v1051
    %1690 = vmatprep.subr.mxu0 %v1056
    %1691 = vmatpush1.msra.mxu0 %v1055
    %1692 = vmatprep.subr.mxu0 %v1060
    %1693 = vmatpush1.msra.mxu0 %v1059
    %1694 = vmatprep.subr.mxu0 %v1064
    %1695 = vmatpush1.msra.mxu0 %v1063
    %1696 = vmatprep.subr.mxu0 %v1068
    %1697 = vmatpush1.msra.mxu0 %v1067
    %1698 = vmatprep.subr.mxu0 %v1072
    %1699 = vmatpush1.msra.mxu0 %v1071
    %1700 = vmatprep.subr.mxu0 %v1076
    %1701 = vmatpush1.msra.mxu0 %v1075
    %1702 = vmatprep.subr.mxu0 %v1080
    %1703 = vmatpush1.msra.mxu0 %v1079
    %1704 = vmatprep.subr.mxu0 %v1084
    %1705 = vmatpush1.msra.mxu0 %v1083
    %1706 = vmatprep.subr.mxu0 %v1088
    %1707 = vmatpush1.msra.mxu0 %v1087
    %1708 = vmatprep.subr.mxu0 %v1092
    %1709 = vmatpush1.msra.mxu0 %v1091
    %1710 = vmatprep.subr.mxu0 %v1096
    %1711 = vmatpush1.msra.mxu0 %v1095
    %1712 = vmatprep.subr.mxu0 %v1100
    %1713 = vmatpush1.msra.mxu0 %v1099
    %1714 = vmatprep.subr.mxu0 %v1104
    %1715 = vmatpush1.msra.mxu0 %v1103
    %1716 = vmatprep.subr.mxu0 %v1108
    %1717 = vmatpush1.msra.mxu0 %v1107
    %1718 = vmatprep.subr.mxu0 %v1112
    %1719 = vmatpush1.msra.mxu0 %v1111
    %1720 = vmatprep.subr.mxu0 %v1116
    %1721 = vmatpush1.msra.mxu0 %v1115
    %1722 = vmatprep.subr.mxu0 %v1120
    %1723 = vmatpush1.msra.mxu0 %v1119
    %1724 = vmatprep.subr.mxu0 %v1124
    %1725 = vmatpush1.msra.mxu0 %v1123
    %1726 = vmatprep.subr.mxu0 %v1128
    %1727 = vmatpush1.msra.mxu0 %v1127
    %1728 = vmatprep.subr.mxu0 %v1132
    %1729 = vmatpush1.msra.mxu0 %v1131
    %1730 = vmatprep.subr.mxu0 %v1136
    %1731 = vmatpush1.msra.mxu0 %v1135
    %1732 = vmatprep.subr.mxu0 %v1140
    %1733 = vmatpush1.msra.mxu0 %v1139
    %1734 = vmatprep.subr.mxu0 %v1144
    %1735 = vmatpush1.msra.mxu0 %v1143
    %1736 = vmatprep.subr.mxu0 %v1148
    %1737 = vmatpush1.msra.mxu0 %v1147
    %1738 = vmatprep.subr.mxu0 %v1152
    %1739 = vmatpush1.msra.mxu0 %v1151
    %1740 = vmatprep.mubr.f32.mxu0 %v1019
    %1741 = vmatmul.mubr.f32.gmra.mrb[0].mxu0 %v647
    %v1742 = vpop.f32.mrb[0].mxu0
    %v1743 = vadd.f32 0.0, %v1742
    %v1744 = vpop.f32.mrb[0].mxu0
    %v1745 = vadd.f32 0.0, %v1744
    %1746 = vmatprep.mubr.f32.mxu0 %v1020
    %1747 = vmatmul.mubr.f32.gmra.mrb[0].mxu0 %v648
    %v1748 = vpop.f32.mrb[0].mxu0
    %v1749 = vadd.f32 0.0, %v1748
    %v1750 = vpop.f32.mrb[0].mxu0
    %v1751 = vadd.f32 0.0, %v1750
    %1752 = vmatprep.mubr.f32.mxu0 %v1021
    %1753 = vmatmul.mubr.f32.gmra.mrb[0].mxu0 %v649
    %v1754 = vpop.f32.mrb[0].mxu0
    %v1755 = vadd.f32 0.0, %v1754
    %v1756 = vpop.f32.mrb[0].mxu0
    %v1757 = vadd.f32 0.0, %v1756
    %1758 = vmatprep.mubr.f32.mxu0 %v1022
    %1759 = vmatmul.mubr.f32.gmra.mrb[0].mxu0 %v650
    %v1760 = vpop.f32.mrb[0].mxu0
    %v1761 = vadd.f32 0.0, %v1760
    %v1762 = vpop.f32.mrb[0].mxu0
    %v1763 = vadd.f32 0.0, %v1762
    %1764 = vdwg.mxu0
    %1765 = vmatprep.subr.mxu0 %v1156
    %1766 = vmatpush1.msra.mxu0 %v1155
    %1767 = vmatprep.subr.mxu0 %v1160
    %1768 = vmatpush1.msra.mxu0 %v1159
    %1769 = vmatprep.subr.mxu0 %v1164
    %1770 = vmatpush1.msra.mxu0 %v1163
    %1771 = vmatprep.subr.mxu0 %v1168
    %1772 = vmatpush1.msra.mxu0 %v1167
    %1773 = vmatprep.subr.mxu0 %v1172
    %1774 = vmatpush1.msra.mxu0 %v1171
    %1775 = vmatprep.subr.mxu0 %v1176
    %1776 = vmatpush1.msra.mxu0 %v1175
    %1777 = vmatprep.subr.mxu0 %v1180
    %1778 = vmatpush1.msra.mxu0 %v1179
    %1779 = vmatprep.subr.mxu0 %v1184
    %1780 = vmatpush1.msra.mxu0 %v1183
    %1781 = vmatprep.subr.mxu0 %v1188
    %1782 = vmatpush1.msra.mxu0 %v1187
    %1783 = vmatprep.subr.mxu0 %v1192
    %1784 = vmatpush1.msra.mxu0 %v1191
    %1785 = vmatprep.subr.mxu0 %v1196
    %1786 = vmatpush1.msra.mxu0 %v1195
    %1787 = vmatprep.subr.mxu0 %v1200
    %1788 = vmatpush1.msra.mxu0 %v1199
    %1789 = vmatprep.subr.mxu0 %v1204
    %1790 = vmatpush1.msra.mxu0 %v1203
    %1791 = vmatprep.subr.mxu0 %v1208
    %1792 = vmatpush1.msra.mxu0 %v1207
    %1793 = vmatprep.subr.mxu0 %v1212
    %1794 = vmatpush1.msra.mxu0 %v1211
    %1795 = vmatprep.subr.mxu0 %v1216
    %1796 = vmatpush1.msra.mxu0 %v1215
    %1797 = vmatprep.subr.mxu0 %v1220
    %1798 = vmatpush1.msra.mxu0 %v1219
    %1799 = vmatprep.subr.mxu0 %v1224
    %1800 = vmatpush1.msra.mxu0 %v1223
    %1801 = vmatprep.subr.mxu0 %v1228
    %1802 = vmatpush1.msra.mxu0 %v1227
    %1803 = vmatprep.subr.mxu0 %v1232
    %1804 = vmatpush1.msra.mxu0 %v1231
    %1805 = vmatprep.subr.mxu0 %v1236
    %1806 = vmatpush1.msra.mxu0 %v1235
    %1807 = vmatprep.subr.mxu0 %v1240
    %1808 = vmatpush1.msra.mxu0 %v1239
    %1809 = vmatprep.subr.mxu0 %v1244
    %1810 = vmatpush1.msra.mxu0 %v1243
    %1811 = vmatprep.subr.mxu0 %v1248
    %1812 = vmatpush1.msra.mxu0 %v1247
    %1813 = vmatprep.subr.mxu0 %v1252
    %1814 = vmatpush1.msra.mxu0 %v1251
    %1815 = vmatprep.subr.mxu0 %v1256
    %1816 = vmatpush1.msra.mxu0 %v1255
    %1817 = vmatprep.subr.mxu0 %v1260
    %1818 = vmatpush1.msra.mxu0 %v1259
    %1819 = vmatprep.subr.mxu0 %v1264
    %1820 = vmatpush1.msra.mxu0 %v1263
    %1821 = vmatprep.subr.mxu0 %v1268
    %1822 = vmatpush1.msra.mxu0 %v1267
    %1823 = vmatprep.subr.mxu0 %v1272
    %1824 = vmatpush1.msra.mxu0 %v1271
    %1825 = vmatprep.subr.mxu0 %v1276
    %1826 = vmatpush1.msra.mxu0 %v1275
    %1827 = vmatprep.subr.mxu0 %v1280
    %1828 = vmatpush1.msra.mxu0 %v1279
    %1829 = vmatprep.mubr.f32.mxu0 %v1020
    %1830 = vmatmul.mubr.f32.gmra.mrb[0].mxu0 %v648
    %v1831 = vpop.f32.mrb[0].mxu0
    %v1832 = vadd.f32 %v1743, %v1831
    %v1833 = vpop.f32.mrb[0].mxu0
    %v1834 = vadd.f32 %v1745, %v1833
    %1835 = vmatprep.mubr.f32.mxu0 %v1021
    %1836 = vmatmul.mubr.f32.gmra.mrb[0].mxu0 %v649
    %v1837 = vpop.f32.mrb[0].mxu0
    %v1838 = vadd.f32 %v1749, %v1837
    %v1839 = vpop.f32.mrb[0].mxu0
    %v1840 = vadd.f32 %v1751, %v1839
    %1841 = vmatprep.mubr.f32.mxu0 %v1022
    %1842 = vmatmul.mubr.f32.gmra.mrb[0].mxu0 %v650
    %v1843 = vpop.f32.mrb[0].mxu0
    %v1844 = vadd.f32 %v1755, %v1843
    %v1845 = vpop.f32.mrb[0].mxu0
    %v1846 = vadd.f32 %v1757, %v1845
    %1847 = vmatprep.mubr.f32.mxu0 %v1023
    %1848 = vmatmul.mubr.f32.gmra.mrb[0].mxu0 %v651
    %v1849 = vpop.f32.mrb[0].mxu0
    %v1850 = vadd.f32 %v1761, %v1849
    %v1851 = vpop.f32.mrb[0].mxu0
    %v1852 = vadd.f32 %v1763, %v1851
    %1853 = vdwg.mxu0
    %1854 = vmatprep.subr.mxu0 %v1284
    %1855 = vmatpush1.msra.mxu0 %v1283
    %1856 = vmatprep.subr.mxu0 %v1288
    %1857 = vmatpush1.msra.mxu0 %v1287
    %1858 = vmatprep.subr.mxu0 %v1292
    %1859 = vmatpush1.msra.mxu0 %v1291
    %1860 = vmatprep.subr.mxu0 %v1296
    %1861 = vmatpush1.msra.mxu0 %v1295
    %1862 = vmatprep.subr.mxu0 %v1300
    %1863 = vmatpush1.msra.mxu0 %v1299
    %1864 = vmatprep.subr.mxu0 %v1304
    %1865 = vmatpush1.msra.mxu0 %v1303
    %1866 = vmatprep.subr.mxu0 %v1308
    %1867 = vmatpush1.msra.mxu0 %v1307
    %1868 = vmatprep.subr.mxu0 %v1312
    %1869 = vmatpush1.msra.mxu0 %v1311
    %1870 = vmatprep.subr.mxu0 %v1316
    %1871 = vmatpush1.msra.mxu0 %v1315
    %1872 = vmatprep.subr.mxu0 %v1320
    %1873 = vmatpush1.msra.mxu0 %v1319
    %1874 = vmatprep.subr.mxu0 %v1324
    %1875 = vmatpush1.msra.mxu0 %v1323
    %1876 = vmatprep.subr.mxu0 %v1328
    %1877 = vmatpush1.msra.mxu0 %v1327
    %1878 = vmatprep.subr.mxu0 %v1332
    %1879 = vmatpush1.msra.mxu0 %v1331
    %1880 = vmatprep.subr.mxu0 %v1336
    %1881 = vmatpush1.msra.mxu0 %v1335
    %1882 = vmatprep.subr.mxu0 %v1340
    %1883 = vmatpush1.msra.mxu0 %v1339
    %1884 = vmatprep.subr.mxu0 %v1344
    %1885 = vmatpush1.msra.mxu0 %v1343
    %1886 = vmatprep.subr.mxu0 %v1348
    %1887 = vmatpush1.msra.mxu0 %v1347
    %1888 = vmatprep.subr.mxu0 %v1352
    %1889 = vmatpush1.msra.mxu0 %v1351
    %1890 = vmatprep.subr.mxu0 %v1356
    %1891 = vmatpush1.msra.mxu0 %v1355
    %1892 = vmatprep.subr.mxu0 %v1360
    %1893 = vmatpush1.msra.mxu0 %v1359
    %1894 = vmatprep.subr.mxu0 %v1364
    %1895 = vmatpush1.msra.mxu0 %v1363
    %1896 = vmatprep.subr.mxu0 %v1368
    %1897 = vmatpush1.msra.mxu0 %v1367
    %1898 = vmatprep.subr.mxu0 %v1372
    %1899 = vmatpush1.msra.mxu0 %v1371
    %1900 = vmatprep.subr.mxu0 %v1376
    %1901 = vmatpush1.msra.mxu0 %v1375
    %1902 = vmatprep.subr.mxu0 %v1380
    %1903 = vmatpush1.msra.mxu0 %v1379
    %1904 = vmatprep.subr.mxu0 %v1384
    %1905 = vmatpush1.msra.mxu0 %v1383
    %1906 = vmatprep.subr.mxu0 %v1388
    %1907 = vmatpush1.msra.mxu0 %v1387
    %1908 = vmatprep.subr.mxu0 %v1392
    %1909 = vmatpush1.msra.mxu0 %v1391
    %1910 = vmatprep.subr.mxu0 %v1396
    %1911 = vmatpush1.msra.mxu0 %v1395
    %1912 = vmatprep.subr.mxu0 %v1400
    %1913 = vmatpush1.msra.mxu0 %v1399
    %1914 = vmatprep.subr.mxu0 %v1404
    %1915 = vmatpush1.msra.mxu0 %v1403
    %1916 = vmatprep.subr.mxu0 %v1408
    %1917 = vmatpush1.msra.mxu0 %v1407
    %1918 = vmatprep.mubr.f32.mxu0 %v1021
    %1919 = vmatmul.mubr.f32.gmra.mrb[0].mxu0 %v649
    %v1920 = vpop.f32.mrb[0].mxu0
    %v1921 = vadd.f32 %v1832, %v1920
    %v1922 = vpop.f32.mrb[0].mxu0
    %v1923 = vadd.f32 %v1834, %v1922
    %1924 = vmatprep.mubr.f32.mxu0 %v1022
    %1925 = vmatmul.mubr.f32.gmra.mrb[0].mxu0 %v650
    %v1926 = vpop.f32.mrb[0].mxu0
    %v1927 = vadd.f32 %v1838, %v1926
    %v1928 = vpop.f32.mrb[0].mxu0
    %v1929 = vadd.f32 %v1840, %v1928
    %1930 = vmatprep.mubr.f32.mxu0 %v1023
    %1931 = vmatmul.mubr.f32.gmra.mrb[0].mxu0 %v651
    %v1932 = vpop.f32.mrb[0].mxu0
    %v1933 = vadd.f32 %v1844, %v1932
    %v1934 = vpop.f32.mrb[0].mxu0
    %v1935 = vadd.f32 %v1846, %v1934
    %1936 = vmatprep.mubr.f32.mxu0 %v1024
    %1937 = vmatmul.mubr.f32.gmra.mrb[0].mxu0 %v652
    %v1938 = vpop.f32.mrb[0].mxu0
    %v1939 = vadd.f32 %v1850, %v1938
    %v1940 = vpop.f32.mrb[0].mxu0
    %v1941 = vadd.f32 %v1852, %v1940
    %1942 = vdwg.mxu0
    %v1943 = vmax.f32 %v1654, %v1656
    %v1944 = vmax.f32 %v1660, %v1662
    %v1945 = vmax.f32 %v1666, %v1668
    %v1946 = vmax.f32 %v1672, %v1674
    %v1947 = vmax.f32 %v1921, %v1923
    %v1948 = vmax.f32 %v1927, %v1929
    %v1949 = vmax.f32 %v1933, %v1935
    %v1950 = vmax.f32 %v1939, %v1941
    %v1951 = vmax.f32 %v1943, %v1947
    %v1952 = vmax.f32 %v1944, %v1948
    %v1953 = vmax.f32 %v1945, %v1949
    %v1954 = vmax.f32 %v1946, %v1950
    %v1955 = vld [vmem:[#allocation7] sm:$0x1]
    %v1957 = vlaneseq
    %v1958 = vshrl.u32 %v1957, 7
    %v1959 = vsub.s32 0, %v1958
    %v1960 = vrot.slane %v1955, %v1959
    %v1962 = vadd.f32 %v1951, %v1960
    %v1963 = vadd.f32 %v1952, %v1960
    %v1964 = vadd.f32 %v1953, %v1960
    %v1965 = vadd.f32 %v1954, %v1960
    %v1966 = vmax.f32 %v1962, 0.0
    %v1967 = vmax.f32 %v1963, 0.0
    %v1968 = vmax.f32 %v1964, 0.0
    %v1969 = vmax.f32 %v1965, 0.0
    %v1970 = vld [vmem:[#allocation9] sm:$0xff]
    %v1971 = vld [vmem:[#allocation9 + $0x8] sm:$0xff]
    %v1972 = vld [vmem:[#allocation9 + $0x10] sm:$0xff]
    %v1973 = vld [vmem:[#allocation9 + $0x18] sm:$0xff]
    %v1974 = vld [vmem:[#allocation9 + $0x20] sm:$0xff]
    %v1975 = vld [vmem:[#allocation9 + $0x28] sm:$0xff]
    %v1976 = vld [vmem:[#allocation9 + $0x30] sm:$0xff]
    %v1977 = vld [vmem:[#allocation9 + $0x38] sm:$0xff]
    %v1978 = vld [vmem:[#allocation9 + $0x40] sm:$0xff]
    %v1979 = vld [vmem:[#allocation9 + $0x48] sm:$0xff]
    %v1980 = vld [vmem:[#allocation9 + $0x50] sm:$0xff]
    %v1981 = vld [vmem:[#allocation9 + $0x58] sm:$0xff]
    %v1982 = vld [vmem:[#allocation9 + $0x60] sm:$0xff]
    %v1983 = vld [vmem:[#allocation9 + $0x68] sm:$0xff]
    %v1984 = vld [vmem:[#allocation9 + $0x70] sm:$0xff]
    %v1985 = vld [vmem:[#allocation9 + $0x78] sm:$0xff]
    %v1986 = vld [vmem:[#allocation9 + $0x80] sm:$0xff]
    %v1987 = vld [vmem:[#allocation9 + $0x88] sm:$0xff]
    %v1988 = vld [vmem:[#allocation9 + $0x90] sm:$0xff]
    %v1989 = vld [vmem:[#allocation9 + $0x98] sm:$0xff]
    %v1990 = vld [vmem:[#allocation9 + $0xa0] sm:$0xff]
    %v1991 = vld [vmem:[#allocation9 + $0xa8] sm:$0xff]
    %v1992 = vld [vmem:[#allocation9 + $0xb0] sm:$0xff]
    %v1993 = vld [vmem:[#allocation9 + $0xb8] sm:$0xff]
    %v1994 = vld [vmem:[#allocation9 + $0xc0] sm:$0xff]
    %v1995 = vld [vmem:[#allocation9 + $0xc8] sm:$0xff]
    %v1996 = vld [vmem:[#allocation9 + $0xd0] sm:$0xff]
    %v1997 = vld [vmem:[#allocation9 + $0xd8] sm:$0xff]
    %v1998 = vld [vmem:[#allocation9 + $0xe0] sm:$0xff]
    %v1999 = vld [vmem:[#allocation9 + $0xe8] sm:$0xff]
    %v2000 = vld [vmem:[#allocation9 + $0xf0] sm:$0xff]
    %v2001 = vld [vmem:[#allocation9 + $0xf8] sm:$0xff]
    %v2002 = vld [vmem:[#allocation9 + $0x100] sm:$0xff]
    %v2003 = vld [vmem:[#allocation9 + $0x108] sm:$0xff]
    %v2004 = vld [vmem:[#allocation9 + $0x110] sm:$0xff]
    %v2005 = vld [vmem:[#allocation9 + $0x118] sm:$0xff]
    %v2006 = vld [vmem:[#allocation9 + $0x120] sm:$0xff]
    %v2007 = vld [vmem:[#allocation9 + $0x128] sm:$0xff]
    %v2008 = vld [vmem:[#allocation9 + $0x130] sm:$0xff]
    %v2009 = vld [vmem:[#allocation9 + $0x138] sm:$0xff]
    %v2010 = vld [vmem:[#allocation9 + $0x140] sm:$0xff]
    %v2011 = vld [vmem:[#allocation9 + $0x148] sm:$0xff]
    %v2012 = vld [vmem:[#allocation9 + $0x150] sm:$0xff]
    %v2013 = vld [vmem:[#allocation9 + $0x158] sm:$0xff]
    %v2014 = vld [vmem:[#allocation9 + $0x160] sm:$0xff]
    %v2015 = vld [vmem:[#allocation9 + $0x168] sm:$0xff]
    %v2016 = vld [vmem:[#allocation9 + $0x170] sm:$0xff]
    %v2017 = vld [vmem:[#allocation9 + $0x178] sm:$0xff]
    %v2018 = vld [vmem:[#allocation9 + $0x180] sm:$0xff]
    %v2019 = vld [vmem:[#allocation9 + $0x188] sm:$0xff]
    %v2020 = vld [vmem:[#allocation9 + $0x190] sm:$0xff]
    %v2021 = vld [vmem:[#allocation9 + $0x198] sm:$0xff]
    %v2022 = vld [vmem:[#allocation9 + $0x1a0] sm:$0xff]
    %v2023 = vld [vmem:[#allocation9 + $0x1a8] sm:$0xff]
    %v2024 = vld [vmem:[#allocation9 + $0x1b0] sm:$0xff]
    %v2025 = vld [vmem:[#allocation9 + $0x1b8] sm:$0xff]
    %v2026 = vld [vmem:[#allocation9 + $0x1c0] sm:$0xff]
    %v2027 = vld [vmem:[#allocation9 + $0x1c8] sm:$0xff]
    %v2028 = vld [vmem:[#allocation9 + $0x1d0] sm:$0xff]
    %v2029 = vld [vmem:[#allocation9 + $0x1d8] sm:$0xff]
    %v2030 = vld [vmem:[#allocation9 + $0x1e0] sm:$0xff]
    %v2031 = vld [vmem:[#allocation9 + $0x1e8] sm:$0xff]
    %v2032 = vld [vmem:[#allocation9 + $0x1f0] sm:$0xff]
    %v2033 = vld [vmem:[#allocation9 + $0x1f8] sm:$0xff]
    %v2034 = vld [vmem:[#allocation10] sm:$0x1]
    %v2036 = vlaneseq
    %v2037 = vshrl.u32 %v2036, 7
    %v2038 = vsub.s32 0, %v2037
    %v2039 = vrot.slane %v2034, %v2038
    %2041 = vmatprep.subr.mxu0 0.0
    %2042 = vmatpush1.msra.mxu0 %v1970
    %2043 = vmatprep.subr.mxu0 0.0
    %2044 = vmatpush1.msra.mxu0 %v1971
    %2045 = vmatprep.subr.mxu0 0.0
    %2046 = vmatpush1.msra.mxu0 %v1972
    %2047 = vmatprep.subr.mxu0 0.0
    %2048 = vmatpush1.msra.mxu0 %v1973
    %2049 = vmatprep.subr.mxu0 0.0
    %2050 = vmatpush1.msra.mxu0 %v1974
    %2051 = vmatprep.subr.mxu0 0.0
    %2052 = vmatpush1.msra.mxu0 %v1975
    %2053 = vmatprep.subr.mxu0 0.0
    %2054 = vmatpush1.msra.mxu0 %v1976
    %2055 = vmatprep.subr.mxu0 0.0
    %2056 = vmatpush1.msra.mxu0 %v1977
    %2057 = vmatprep.subr.mxu0 0.0
    %2058 = vmatpush1.msra.mxu0 %v1978
    %2059 = vmatprep.subr.mxu0 0.0
    %2060 = vmatpush1.msra.mxu0 %v1979
    %2061 = vmatprep.subr.mxu0 0.0
    %2062 = vmatpush1.msra.mxu0 %v1980
    %2063 = vmatprep.subr.mxu0 0.0
    %2064 = vmatpush1.msra.mxu0 %v1981
    %2065 = vmatprep.subr.mxu0 0.0
    %2066 = vmatpush1.msra.mxu0 %v1982
    %2067 = vmatprep.subr.mxu0 0.0
    %2068 = vmatpush1.msra.mxu0 %v1983
    %2069 = vmatprep.subr.mxu0 0.0
    %2070 = vmatpush1.msra.mxu0 %v1984
    %2071 = vmatprep.subr.mxu0 0.0
    %2072 = vmatpush1.msra.mxu0 %v1985
    %2073 = vmatprep.subr.mxu0 0.0
    %2074 = vmatpush1.msra.mxu0 %v1986
    %2075 = vmatprep.subr.mxu0 0.0
    %2076 = vmatpush1.msra.mxu0 %v1987
    %2077 = vmatprep.subr.mxu0 0.0
    %2078 = vmatpush1.msra.mxu0 %v1988
    %2079 = vmatprep.subr.mxu0 0.0
    %2080 = vmatpush1.msra.mxu0 %v1989
    %2081 = vmatprep.subr.mxu0 0.0
    %2082 = vmatpush1.msra.mxu0 %v1990
    %2083 = vmatprep.subr.mxu0 0.0
    %2084 = vmatpush1.msra.mxu0 %v1991
    %2085 = vmatprep.subr.mxu0 0.0
    %2086 = vmatpush1.msra.mxu0 %v1992
    %2087 = vmatprep.subr.mxu0 0.0
    %2088 = vmatpush1.msra.mxu0 %v1993
    %2089 = vmatprep.subr.mxu0 0.0
    %2090 = vmatpush1.msra.mxu0 %v1994
    %2091 = vmatprep.subr.mxu0 0.0
    %2092 = vmatpush1.msra.mxu0 %v1995
    %2093 = vmatprep.subr.mxu0 0.0
    %2094 = vmatpush1.msra.mxu0 %v1996
    %2095 = vmatprep.subr.mxu0 0.0
    %2096 = vmatpush1.msra.mxu0 %v1997
    %2097 = vmatprep.subr.mxu0 0.0
    %2098 = vmatpush1.msra.mxu0 %v1998
    %2099 = vmatprep.subr.mxu0 0.0
    %2100 = vmatpush1.msra.mxu0 %v1999
    %2101 = vmatprep.subr.mxu0 0.0
    %2102 = vmatpush1.msra.mxu0 %v2000
    %2103 = vmatprep.subr.mxu0 0.0
    %2104 = vmatpush1.msra.mxu0 %v2001
    %2105 = vmatprep.mubr.f32.mxu0 %v1967
    %2106 = vmatmul.mubr.f32.gmra.mrb[0].mxu0 %v1966
    %v2107 = vpop.f32.mrb[0].mxu0
    %v2108 = vadd.f32 %v2039, %v2107
    %v2109 = vpop.f32.mrb[0].mxu0
    %2110 = vdwg.mxu0
    %2111 = vmatprep.subr.mxu0 0.0
    %2112 = vmatpush1.msra.mxu0 %v2002
    %2113 = vmatprep.subr.mxu0 0.0
    %2114 = vmatpush1.msra.mxu0 %v2003
    %2115 = vmatprep.subr.mxu0 0.0
    %2116 = vmatpush1.msra.mxu0 %v2004
    %2117 = vmatprep.subr.mxu0 0.0
    %2118 = vmatpush1.msra.mxu0 %v2005
    %2119 = vmatprep.subr.mxu0 0.0
    %2120 = vmatpush1.msra.mxu0 %v2006
    %2121 = vmatprep.subr.mxu0 0.0
    %2122 = vmatpush1.msra.mxu0 %v2007
    %2123 = vmatprep.subr.mxu0 0.0
    %2124 = vmatpush1.msra.mxu0 %v2008
    %2125 = vmatprep.subr.mxu0 0.0
    %2126 = vmatpush1.msra.mxu0 %v2009
    %2127 = vmatprep.subr.mxu0 0.0
    %2128 = vmatpush1.msra.mxu0 %v2010
    %2129 = vmatprep.subr.mxu0 0.0
    %2130 = vmatpush1.msra.mxu0 %v2011
    %2131 = vmatprep.subr.mxu0 0.0
    %2132 = vmatpush1.msra.mxu0 %v2012
    %2133 = vmatprep.subr.mxu0 0.0
    %2134 = vmatpush1.msra.mxu0 %v2013
    %2135 = vmatprep.subr.mxu0 0.0
    %2136 = vmatpush1.msra.mxu0 %v2014
    %2137 = vmatprep.subr.mxu0 0.0
    %2138 = vmatpush1.msra.mxu0 %v2015
    %2139 = vmatprep.subr.mxu0 0.0
    %2140 = vmatpush1.msra.mxu0 %v2016
    %2141 = vmatprep.subr.mxu0 0.0
    %2142 = vmatpush1.msra.mxu0 %v2017
    %2143 = vmatprep.subr.mxu0 0.0
    %2144 = vmatpush1.msra.mxu0 %v2018
    %2145 = vmatprep.subr.mxu0 0.0
    %2146 = vmatpush1.msra.mxu0 %v2019
    %2147 = vmatprep.subr.mxu0 0.0
    %2148 = vmatpush1.msra.mxu0 %v2020
    %2149 = vmatprep.subr.mxu0 0.0
    %2150 = vmatpush1.msra.mxu0 %v2021
    %2151 = vmatprep.subr.mxu0 0.0
    %2152 = vmatpush1.msra.mxu0 %v2022
    %2153 = vmatprep.subr.mxu0 0.0
    %2154 = vmatpush1.msra.mxu0 %v2023
    %2155 = vmatprep.subr.mxu0 0.0
    %2156 = vmatpush1.msra.mxu0 %v2024
    %2157 = vmatprep.subr.mxu0 0.0
    %2158 = vmatpush1.msra.mxu0 %v2025
    %2159 = vmatprep.subr.mxu0 0.0
    %2160 = vmatpush1.msra.mxu0 %v2026
    %2161 = vmatprep.subr.mxu0 0.0
    %2162 = vmatpush1.msra.mxu0 %v2027
    %2163 = vmatprep.subr.mxu0 0.0
    %2164 = vmatpush1.msra.mxu0 %v2028
    %2165 = vmatprep.subr.mxu0 0.0
    %2166 = vmatpush1.msra.mxu0 %v2029
    %2167 = vmatprep.subr.mxu0 0.0
    %2168 = vmatpush1.msra.mxu0 %v2030
    %2169 = vmatprep.subr.mxu0 0.0
    %2170 = vmatpush1.msra.mxu0 %v2031
    %2171 = vmatprep.subr.mxu0 0.0
    %2172 = vmatpush1.msra.mxu0 %v2032
    %2173 = vmatprep.subr.mxu0 0.0
    %2174 = vmatpush1.msra.mxu0 %v2033
    %2175 = vmatprep.mubr.f32.mxu0 %v1969
    %2176 = vmatmul.mubr.f32.gmra.mrb[0].mxu0 %v1968
    %v2177 = vpop.f32.mrb[0].mxu0
    %v2178 = vadd.f32 %v2108, %v2177
    %v2179 = vpop.f32.mrb[0].mxu0
    %2180 = vdwg.mxu0
    %v2181 = vmax.f32 %v2178, 0.0
    %v2182 = vld [vmem:[#allocation12] sm:$0xff]
    %v2183 = vld [vmem:[#allocation12 + $0x8] sm:$0xff]
    %v2184 = vld [vmem:[#allocation12 + $0x10] sm:$0xff]
    %v2185 = vld [vmem:[#allocation12 + $0x18] sm:$0xff]
    %v2186 = vld [vmem:[#allocation12 + $0x20] sm:$0xff]
    %v2187 = vld [vmem:[#allocation12 + $0x28] sm:$0xff]
    %v2188 = vld [vmem:[#allocation12 + $0x30] sm:$0xff]
    %v2189 = vld [vmem:[#allocation12 + $0x38] sm:$0xff]
    %v2190 = vld [vmem:[#allocation12 + $0x40] sm:$0xff]
    %v2191 = vld [vmem:[#allocation12 + $0x48] sm:$0xff]
    %v2192 = vld [vmem:[#allocation12 + $0x50] sm:$0xff]
    %v2193 = vld [vmem:[#allocation12 + $0x58] sm:$0xff]
    %v2194 = vld [vmem:[#allocation12 + $0x60] sm:$0xff]
    %v2195 = vld [vmem:[#allocation12 + $0x68] sm:$0xff]
    %v2196 = vld [vmem:[#allocation12 + $0x70] sm:$0xff]
    %v2197 = vld [vmem:[#allocation12 + $0x78] sm:$0xff]
    %v2198 = vld [vmem:[#allocation13] sm:$0x1]
    %v2200 = vlaneseq
    %v2201 = vshrl.u32 %v2200, 7
    %v2202 = vsub.s32 0, %v2201
    %v2203 = vrot.slane %v2198, %v2202
    %2205 = vmatprep.subr.mxu0 0.0
    %2206 = vmatpush1.msra.mxu0 %v2182
    %2207 = vmatprep.subr.mxu0 0.0
    %2208 = vmatpush1.msra.mxu0 %v2183
    %2209 = vmatprep.subr.mxu0 0.0
    %2210 = vmatpush1.msra.mxu0 %v2184
    %2211 = vmatprep.subr.mxu0 0.0
    %2212 = vmatpush1.msra.mxu0 %v2185
    %2213 = vmatprep.subr.mxu0 0.0
    %2214 = vmatpush1.msra.mxu0 %v2186
    %2215 = vmatprep.subr.mxu0 0.0
    %2216 = vmatpush1.msra.mxu0 %v2187
    %2217 = vmatprep.subr.mxu0 0.0
    %2218 = vmatpush1.msra.mxu0 %v2188
    %2219 = vmatprep.subr.mxu0 0.0
    %2220 = vmatpush1.msra.mxu0 %v2189
    %2221 = vmatprep.subr.mxu0 0.0
    %2222 = vmatpush1.msra.mxu0 %v2190
    %2223 = vmatprep.subr.mxu0 0.0
    %2224 = vmatpush1.msra.mxu0 %v2191
    %2225 = vmatprep.subr.mxu0 0.0
    %2226 = vmatpush1.msra.mxu0 %v2192
    %2227 = vmatprep.subr.mxu0 0.0
    %2228 = vmatpush1.msra.mxu0 %v2193
    %2229 = vmatprep.subr.mxu0 0.0
    %2230 = vmatpush1.msra.mxu0 %v2194
    %2231 = vmatprep.subr.mxu0 0.0
    %2232 = vmatpush1.msra.mxu0 %v2195
    %2233 = vmatprep.subr.mxu0 0.0
    %2234 = vmatpush1.msra.mxu0 %v2196
    %2235 = vmatprep.subr.mxu0 0.0
    %2236 = vmatpush1.msra.mxu0 %v2197
    %2237 = vmatprep.subr.mxu0 0.0
    %2238 = vmatpush1.msra.mxu0 0.0
    %2239 = vmatprep.subr.mxu0 0.0
    %2240 = vmatpush1.msra.mxu0 0.0
    %2241 = vmatprep.subr.mxu0 0.0
    %2242 = vmatpush1.msra.mxu0 0.0
    %2243 = vmatprep.subr.mxu0 0.0
    %2244 = vmatpush1.msra.mxu0 0.0
    %2245 = vmatprep.subr.mxu0 0.0
    %2246 = vmatpush1.msra.mxu0 0.0
    %2247 = vmatprep.subr.mxu0 0.0
    %2248 = vmatpush1.msra.mxu0 0.0
    %2249 = vmatprep.subr.mxu0 0.0
    %2250 = vmatpush1.msra.mxu0 0.0
    %2251 = vmatprep.subr.mxu0 0.0
    %2252 = vmatpush1.msra.mxu0 0.0
    %2253 = vmatprep.subr.mxu0 0.0
    %2254 = vmatpush1.msra.mxu0 0.0
    %2255 = vmatprep.subr.mxu0 0.0
    %2256 = vmatpush1.msra.mxu0 0.0
    %2257 = vmatprep.subr.mxu0 0.0
    %2258 = vmatpush1.msra.mxu0 0.0
    %2259 = vmatprep.subr.mxu0 0.0
    %2260 = vmatpush1.msra.mxu0 0.0
    %2261 = vmatprep.subr.mxu0 0.0
    %2262 = vmatpush1.msra.mxu0 0.0
    %2263 = vmatprep.subr.mxu0 0.0
    %2264 = vmatpush1.msra.mxu0 0.0
    %2265 = vmatprep.subr.mxu0 0.0
    %2266 = vmatpush1.msra.mxu0 0.0
    %2267 = vmatprep.subr.mxu0 0.0
    %2268 = vmatpush1.msra.mxu0 0.0
    %2269 = vmatprep.mubr.f32.mxu0 0.0
    %2270 = vmatmul.mubr.f32.gmra.mrb[0].mxu0 %v2181
    %v2271 = vpop.f32.mrb[0].mxu0
    %v2272 = vadd.f32 %v2203, %v2271
    %v2273 = vpop.f32.mrb[0].mxu0
    %2274 = vdwg.mxu0
    %2275 = vst [vmem:[%s9] sm:$0xff] %v2272
    // Predicated region
    $region70: #{net_forward.1} parent=1 // pred_check
      _
    $region71: #{net_forward.1} parent=1 // pred_check_branch
      %2277 = sbr.rel (0) target = $region73
    $region72: #{net_forward.1} parent=1 // pred_region
      _
    $region73: #{net_forward.1} parent=1 // pred_fallthru
      _
    // Predicated region
    $region74: #{net_forward.1} parent=1 // pred_check
      _
    $region75: #{net_forward.1} parent=1 // pred_check_branch
      %2279 = sbr.rel (0) target = $region77
    $region76: #{net_forward.1} parent=1 // pred_region
      _
    $region77: #{net_forward.1} parent=1 // pred_fallthru
      _
    %2280 = vsyncpa [#allocation3], 1
    %2281 = vsyncpa [#allocation5], 1
    %2282 = vsyncpa [#allocation8], 1
    %2283 = vsyncpa [#allocation11], 1
    %2284 = vsyncpa [#allocation14], 1

</llo_original>
